<compile_context>
chip_gen: v5e
topology: v5e:2x2
jax: 0.10.0
libtpu: 0.0.40
codegen_flags: <defaults>
</compile_context>

<pallas_src>
import functools

import jax
import jax.numpy as jnp
from jax.experimental import pallas as pl
from jax.experimental.pallas import tpu as pltpu


def _spatial_attention_kernel(x_ref, w_ref, m_ref, o_ref, *, ksize, pad, W,
                              c_chunk):
    # x_ref: (NB, C, H*W) in VMEM (native dtype, lane-dense)
    # w_ref: (2*ksize*ksize,) in SMEM (scalar conv taps, f32)
    # m_ref: (8, H*W) in VMEM (per-column-offset masks, rows 0..ksize-1 used)
    # o_ref: (NB, H*W) in VMEM (size-1 channel dim squeezed by BlockSpec)
    NB, C, HW = x_ref.shape

    # ---- Streamed channel reduction: mean & max over dim=1, f32 accum. ----
    ssum = jnp.zeros((NB, HW), jnp.float32)
    smax = None
    for c0 in range(0, C, c_chunk):
        cc = min(c_chunk, C - c0)
        xc = x_ref[:, c0:c0 + cc, :].astype(jnp.float32)     # (NB, cc, HW)
        ssum = ssum + jnp.sum(xc, axis=1)
        cmx = jnp.max(xc, axis=1)
        smax = cmx if smax is None else jnp.maximum(smax, cmx)
    avg = ssum * jnp.float32(1.0 / C)                         # (NB, HW)
    mx = smax                                                 # (NB, HW)

    # ---- Stage 1: ksize column-shifted, masked copies per channel. ----
    # Pad only `pad` lanes per side so edge column shifts read in-bounds; any
    # value that wrapped across a row boundary is zeroed by the column mask
    # (== SAME zero padding in W).  Masks depend only on the output column so
    # they commute with the later row shifts.
    avg_p = jnp.pad(avg, ((0, 0), (pad, pad)))                # (NB, HW + 2*pad)
    max_p = jnp.pad(mx, ((0, 0), (pad, pad)))

    a_sh = []
    m_sh = []
    for kj in range(ksize):
        dj = kj - pad
        a_t = avg_p[:, pad + dj: pad + dj + HW]               # (NB, HW)
        m_t = max_p[:, pad + dj: pad + dj + HW]
        if dj != 0:
            msk = m_ref[kj:kj + 1, :]                         # (1, HW) f32
            a_t = a_t * msk
            m_t = m_t * msk
        a_sh.append(a_t)
        m_sh.append(m_t)

    # ---- Stage 2: per-row-offset weighted combine (pure VALU) + one row
    # shift (di*W, zero padded == SAME zero padding in H) per combine. ----
    k2 = ksize * ksize
    PW = pad * W
    acc = jnp.zeros((NB, HW), jnp.float32)
    for ki in range(ksize):
        di = ki - pad
        comb = jnp.zeros((NB, HW), jnp.float32)
        for kj in range(ksize):
            w_a = w_ref[ki * ksize + kj]                      # scalar (avg ch)
            w_m = w_ref[k2 + ki * ksize + kj]                 # scalar (max ch)
            comb = comb + w_a * a_sh[kj] + w_m * m_sh[kj]
        if di != 0:
            comb_p = jnp.pad(comb, ((0, 0), (PW, PW)))
            comb = comb_p[:, PW + di * W: PW + di * W + HW]
        acc = acc + comb

    # ---- Sigmoid: exp on EUP, explicit reciprocal (exact). ----
    o_ref[...] = pl.reciprocal(1.0 + jnp.exp(-acc),
                               approx=False).astype(o_ref.dtype)


def _choose_batch_block(N, C, HW, itemsize):
    # VMEM budget covers the double-buffered input block (2 * NB*C*HW*itemsize)
    # plus ~20 live (NB, HW) f32 intermediates of the conv phase.
    budget = 32 * 1024 * 1024
    per_row = HW * (20 * 4 + 2 * C * itemsize)
    cap = max(1, min(N, budget // max(per_row, 1)))
    # Largest divisor of N within the cap; prefer multiples of 8 so the
    # (NB, HW) conv values run at full sublane occupancy.  Never returns 1
    # when a bigger divisor of N fits.
    best, best8 = 1, 0
    for d in range(1, cap + 1):
        if N % d == 0:
            best = d
            if d % 8 == 0:
                best8 = d
    return best8 if best8 else best


def spatial_attention(x, weight, kernel_size=7, batch_block=None):
    assert kernel_size in (3, 7), "kernel size must be 3 or 7"
    pad = 3 if kernel_size == 7 else 1
    N, C, H, W = x.shape
    assert weight.shape == (1, 2, kernel_size, kernel_size)
    HW = H * W

    # Free, contiguous reshapes outside the kernel: lane-dense views.
    x_flat = x.reshape(N, C, HW)
    w_flat = weight.reshape(-1).astype(jnp.float32)           # (2*k*k,) -> SMEM

    # Precomputed per-column-offset masks (hoisted out of the kernel body),
    # padded to 8 sublanes.
    col = jnp.arange(HW, dtype=jnp.int32) % W
    mask_rows = []
    for kj in range(kernel_size):
        dj = kj - pad
        mask_rows.append(((col + dj >= 0) & (col + dj < W)).astype(jnp.float32))
    masks = jnp.stack(mask_rows, axis=0)                      # (ksize, HW)
    masks = jnp.pad(masks, ((0, 8 - kernel_size), (0, 0)))    # (8, HW)

    if batch_block is None:
        batch_block = _choose_batch_block(N, C, HW, x.dtype.itemsize)
    NB = batch_block
    assert N % NB == 0
    grid = (N // NB,)

    kernel = functools.partial(
        _spatial_attention_kernel, ksize=kernel_size, pad=pad, W=W,
        c_chunk=min(C, 8))

    itemsize = x.dtype.itemsize
    cost = pl.CostEstimate(
        flops=N * HW * (2 * C + 4 * kernel_size * kernel_size),
        transcendentals=N * HW,
        bytes_accessed=N * C * HW * itemsize + N * HW * itemsize,
    )

    out_flat = pl.pallas_call(
        kernel,
        out_shape=jax.ShapeDtypeStruct((N, 1, HW), x.dtype),
        grid_spec=pltpu.PrefetchScalarGridSpec(
            num_scalar_prefetch=0,
            grid=grid,
            in_specs=[
                # Full (C, HW) in the last two dims -> satisfies (8,128) rule.
                pl.BlockSpec((NB, C, HW), lambda n: (n, 0, 0)),
                # Flat 1-D weights live in SMEM; read as scalars in the kernel.
                pl.BlockSpec(memory_space=pltpu.MemorySpace.SMEM),
                # Tiny mask table, same block for every grid step.
                pl.BlockSpec((8, HW), lambda n: (0, 0)),
            ],
            # Size-1 channel dim squeezed out of the kernel ref; last dims of
            # the block equal the full array dims.
            out_specs=pl.BlockSpec((NB, None, HW), lambda n: (n, 0, 0)),
        ),
        compiler_params=pltpu.CompilerParams(
            dimension_semantics=("parallel",),
            vmem_limit_bytes=48 * 1024 * 1024,
        ),
        cost_estimate=cost,
    )(x_flat, w_flat, masks)

    # TODO(synk): for v7x with N < 2 blocks, add a second "parallel" grid axis
    # splitting H with a pad-row halo so both TensorCores get work.
    return out_flat.reshape(N, 1, H, W)


def _reference(x, weight, kernel_size=7):
    # Pure-JAX reference for correctness checking.
    pad = 3 if kernel_size == 7 else 1
    avg_out = jnp.mean(x, axis=1, keepdims=True)
    max_out = jnp.max(x, axis=1, keepdims=True)
    feat = jnp.concatenate([avg_out, max_out], axis=1)        # (N, 2, H, W)
    conv = jax.lax.conv_general_dilated(
        feat, weight,
        window_strides=(1, 1),
        padding=((pad, pad), (pad, pad)),
        dimension_numbers=("NCHW", "OIHW", "NCHW"),
        precision=jax.lax.Precision.HIGHEST,
    )
    return jax.nn.sigmoid(conv)


if __name__ == "__main__":
    key = jax.random.PRNGKey(0)
    kx, kw = jax.random.split(key)

    N, C, H, W = 2, 4, 16, 16
    kernel_size = 7

    x = jax.random.normal(kx, (N, C, H, W), dtype=jnp.float32)
    # Deterministic synthetic conv weight (Conv2d(2, 1, 7, bias=False) shape).
    weight = 0.1 * jax.random.normal(kw, (1, 2, kernel_size, kernel_size),
                                     dtype=jnp.float32)

    out = spatial_attention(x, weight, kernel_size)
    out = jax.block_until_ready(out)

    ref = _reference(x, weight, kernel_size)
    assert out.shape == (N, 1, H, W)
    assert jnp.allclose(out, ref, atol=1e-5, rtol=1e-5)

    print("KERNEL_OK")
</pallas_src>

<mosaic_0001>
module attributes {stable_mosaic.version = 11 : i64} {
  func.func @_spatial_attention_kernel(%arg0: i32, %arg1: memref<2x4x256xf32, #tpu.memory_space<vmem>>, %arg2: memref<98xf32, #tpu.memory_space<smem>>, %arg3: memref<8x256xf32, #tpu.memory_space<vmem>>, %arg4: memref<2x1x256xf32, #tpu.memory_space<vmem>>) attributes {dimension_semantics = [#tpu.dimension_semantics<parallel>], iteration_bounds = array<i64: 1>, scalar_prefetch = 0 : i64, scratch_operands = 0 : i64, tpu.core_type = #tpu.core_type<tc>, window_params = [{transform_indices = @transform_0, window_bounds = array<i64: 2, 4, 256>}, {transform_indices = @transform_1, window_bounds = array<i64: 98>}, {pipeline_mode = #tpu.pipeline_mode<synchronous>, transform_indices = @transform_2, window_bounds = array<i64: 8, 256>}, {transform_indices = @transform_3, window_bounds = array<i64: 2, 1, 256>}]} {
    %cst = arith.constant 0.000000e+00 : f32
    %0 = vector.broadcast %cst : f32 to vector<2x256xf32>
    %c0 = arith.constant 0 : index
    %c0_0 = arith.constant 0 : index
    %c0_1 = arith.constant 0 : index
    %1 = vector.load %arg1[%c0, %c0_0, %c0_1] : memref<2x4x256xf32, #tpu.memory_space<vmem>>, vector<2x4x256xf32>
    %cst_2 = arith.constant dense<0.000000e+00> : vector<2x256xf32>
    %2 = vector.multi_reduction <add>, %1, %cst_2 [1] : vector<2x4x256xf32> to vector<2x256xf32>
    %3 = arith.addf %0, %2 : vector<2x256xf32>
    %cst_3 = arith.constant dense<0xFF800000> : vector<2x256xf32>
    %4 = vector.multi_reduction <maximumf>, %1, %cst_3 [1] : vector<2x4x256xf32> to vector<2x256xf32>
    %cst_4 = arith.constant 2.500000e-01 : f32
    %5 = vector.broadcast %cst_4 : f32 to vector<2x256xf32>
    %6 = arith.mulf %3, %5 : vector<2x256xf32>
    %c0_i32 = arith.constant 0 : i32
    %7 = arith.sitofp %c0_i32 : i32 to f32
    %8 = vector.broadcast %7 : f32 to vector<2x3xf32>
    %9 = tpu.concatenate %8, %6 in 1 : vector<2x3xf32>, vector<2x256xf32> -> vector<2x259xf32>
    %10 = vector.broadcast %7 : f32 to vector<2x3xf32>
    %11 = tpu.concatenate %9, %10 in 1 : vector<2x259xf32>, vector<2x3xf32> -> vector<2x262xf32>
    %c0_i32_5 = arith.constant 0 : i32
    %12 = arith.sitofp %c0_i32_5 : i32 to f32
    %13 = vector.broadcast %12 : f32 to vector<2x3xf32>
    %14 = tpu.concatenate %13, %4 in 1 : vector<2x3xf32>, vector<2x256xf32> -> vector<2x259xf32>
    %15 = vector.broadcast %12 : f32 to vector<2x3xf32>
    %16 = tpu.concatenate %14, %15 in 1 : vector<2x259xf32>, vector<2x3xf32> -> vector<2x262xf32>
    %17 = vector.extract_strided_slice %11 {offsets = [0, 0], sizes = [2, 256], strides = [1, 1]} : vector<2x262xf32> to vector<2x256xf32>
    %18 = vector.extract_strided_slice %16 {offsets = [0, 0], sizes = [2, 256], strides = [1, 1]} : vector<2x262xf32> to vector<2x256xf32>
    %c0_6 = arith.constant 0 : index
    %c0_7 = arith.constant 0 : index
    %19 = vector.load %arg3[%c0_6, %c0_7] : memref<8x256xf32, #tpu.memory_space<vmem>>, vector<1x256xf32>
    %20 = vector.broadcast %19 : vector<1x256xf32> to vector<2x256xf32>
    %21 = arith.mulf %17, %20 : vector<2x256xf32>
    %22 = vector.broadcast %19 : vector<1x256xf32> to vector<2x256xf32>
    %23 = arith.mulf %18, %22 : vector<2x256xf32>
    %24 = vector.extract_strided_slice %11 {offsets = [0, 1], sizes = [2, 256], strides = [1, 1]} : vector<2x262xf32> to vector<2x256xf32>
    %25 = vector.extract_strided_slice %16 {offsets = [0, 1], sizes = [2, 256], strides = [1, 1]} : vector<2x262xf32> to vector<2x256xf32>
    %c1 = arith.constant 1 : index
    %c0_8 = arith.constant 0 : index
    %26 = vector.load %arg3[%c1, %c0_8] : memref<8x256xf32, #tpu.memory_space<vmem>>, vector<1x256xf32>
    %27 = vector.broadcast %26 : vector<1x256xf32> to vector<2x256xf32>
    %28 = arith.mulf %24, %27 : vector<2x256xf32>
    %29 = vector.broadcast %26 : vector<1x256xf32> to vector<2x256xf32>
    %30 = arith.mulf %25, %29 : vector<2x256xf32>
    %31 = vector.extract_strided_slice %11 {offsets = [0, 2], sizes = [2, 256], strides = [1, 1]} : vector<2x262xf32> to vector<2x256xf32>
    %32 = vector.extract_strided_slice %16 {offsets = [0, 2], sizes = [2, 256], strides = [1, 1]} : vector<2x262xf32> to vector<2x256xf32>
    %c2 = arith.constant 2 : index
    %c0_9 = arith.constant 0 : index
    %33 = vector.load %arg3[%c2, %c0_9] : memref<8x256xf32, #tpu.memory_space<vmem>>, vector<1x256xf32>
    %34 = vector.broadcast %33 : vector<1x256xf32> to vector<2x256xf32>
    %35 = arith.mulf %31, %34 : vector<2x256xf32>
    %36 = vector.broadcast %33 : vector<1x256xf32> to vector<2x256xf32>
    %37 = arith.mulf %32, %36 : vector<2x256xf32>
    %38 = vector.extract_strided_slice %11 {offsets = [0, 3], sizes = [2, 256], strides = [1, 1]} : vector<2x262xf32> to vector<2x256xf32>
    %39 = vector.extract_strided_slice %16 {offsets = [0, 3], sizes = [2, 256], strides = [1, 1]} : vector<2x262xf32> to vector<2x256xf32>
    %40 = vector.extract_strided_slice %11 {offsets = [0, 4], sizes = [2, 256], strides = [1, 1]} : vector<2x262xf32> to vector<2x256xf32>
    %41 = vector.extract_strided_slice %16 {offsets = [0, 4], sizes = [2, 256], strides = [1, 1]} : vector<2x262xf32> to vector<2x256xf32>
    %c4 = arith.constant 4 : index
    %c0_10 = arith.constant 0 : index
    %42 = vector.load %arg3[%c4, %c0_10] : memref<8x256xf32, #tpu.memory_space<vmem>>, vector<1x256xf32>
    %43 = vector.broadcast %42 : vector<1x256xf32> to vector<2x256xf32>
    %44 = arith.mulf %40, %43 : vector<2x256xf32>
    %45 = vector.broadcast %42 : vector<1x256xf32> to vector<2x256xf32>
    %46 = arith.mulf %41, %45 : vector<2x256xf32>
    %47 = vector.extract_strided_slice %11 {offsets = [0, 5], sizes = [2, 256], strides = [1, 1]} : vector<2x262xf32> to vector<2x256xf32>
    %48 = vector.extract_strided_slice %16 {offsets = [0, 5], sizes = [2, 256], strides = [1, 1]} : vector<2x262xf32> to vector<2x256xf32>
    %c5 = arith.constant 5 : index
    %c0_11 = arith.constant 0 : index
    %49 = vector.load %arg3[%c5, %c0_11] : memref<8x256xf32, #tpu.memory_space<vmem>>, vector<1x256xf32>
    %50 = vector.broadcast %49 : vector<1x256xf32> to vector<2x256xf32>
    %51 = arith.mulf %47, %50 : vector<2x256xf32>
    %52 = vector.broadcast %49 : vector<1x256xf32> to vector<2x256xf32>
    %53 = arith.mulf %48, %52 : vector<2x256xf32>
    %54 = vector.extract_strided_slice %11 {offsets = [0, 6], sizes = [2, 256], strides = [1, 1]} : vector<2x262xf32> to vector<2x256xf32>
    %55 = vector.extract_strided_slice %16 {offsets = [0, 6], sizes = [2, 256], strides = [1, 1]} : vector<2x262xf32> to vector<2x256xf32>
    %c6 = arith.constant 6 : index
    %c0_12 = arith.constant 0 : index
    %56 = vector.load %arg3[%c6, %c0_12] : memref<8x256xf32, #tpu.memory_space<vmem>>, vector<1x256xf32>
    %57 = vector.broadcast %56 : vector<1x256xf32> to vector<2x256xf32>
    %58 = arith.mulf %54, %57 : vector<2x256xf32>
    %59 = vector.broadcast %56 : vector<1x256xf32> to vector<2x256xf32>
    %60 = arith.mulf %55, %59 : vector<2x256xf32>
    %cst_13 = arith.constant 0.000000e+00 : f32
    %61 = vector.broadcast %cst_13 : f32 to vector<2x256xf32>
    %cst_14 = arith.constant 0.000000e+00 : f32
    %62 = vector.broadcast %cst_14 : f32 to vector<2x256xf32>
    %c0_15 = arith.constant 0 : index
    %63 = memref.load %arg2[%c0_15] : memref<98xf32, #tpu.memory_space<smem>>
    %c49 = arith.constant 49 : index
    %64 = memref.load %arg2[%c49] : memref<98xf32, #tpu.memory_space<smem>>
    %65 = vector.broadcast %63 : f32 to vector<2x256xf32>
    %66 = arith.mulf %65, %21 : vector<2x256xf32>
    %67 = arith.addf %62, %66 : vector<2x256xf32>
    %68 = vector.broadcast %64 : f32 to vector<2x256xf32>
    %69 = arith.mulf %68, %23 : vector<2x256xf32>
    %70 = arith.addf %67, %69 : vector<2x256xf32>
    %c1_16 = arith.constant 1 : index
    %71 = memref.load %arg2[%c1_16] : memref<98xf32, #tpu.memory_space<smem>>
    %c50 = arith.constant 50 : index
    %72 = memref.load %arg2[%c50] : memref<98xf32, #tpu.memory_space<smem>>
    %73 = vector.broadcast %71 : f32 to vector<2x256xf32>
    %74 = arith.mulf %73, %28 : vector<2x256xf32>
    %75 = arith.addf %70, %74 : vector<2x256xf32>
    %76 = vector.broadcast %72 : f32 to vector<2x256xf32>
    %77 = arith.mulf %76, %30 : vector<2x256xf32>
    %78 = arith.addf %75, %77 : vector<2x256xf32>
    %c2_17 = arith.constant 2 : index
    %79 = memref.load %arg2[%c2_17] : memref<98xf32, #tpu.memory_space<smem>>
    %c51 = arith.constant 51 : index
    %80 = memref.load %arg2[%c51] : memref<98xf32, #tpu.memory_space<smem>>
    %81 = vector.broadcast %79 : f32 to vector<2x256xf32>
    %82 = arith.mulf %81, %35 : vector<2x256xf32>
    %83 = arith.addf %78, %82 : vector<2x256xf32>
    %84 = vector.broadcast %80 : f32 to vector<2x256xf32>
    %85 = arith.mulf %84, %37 : vector<2x256xf32>
    %86 = arith.addf %83, %85 : vector<2x256xf32>
    %c3 = arith.constant 3 : index
    %87 = memref.load %arg2[%c3] : memref<98xf32, #tpu.memory_space<smem>>
    %c52 = arith.constant 52 : index
    %88 = memref.load %arg2[%c52] : memref<98xf32, #tpu.memory_space<smem>>
    %89 = vector.broadcast %87 : f32 to vector<2x256xf32>
    %90 = arith.mulf %89, %38 : vector<2x256xf32>
    %91 = arith.addf %86, %90 : vector<2x256xf32>
    %92 = vector.broadcast %88 : f32 to vector<2x256xf32>
    %93 = arith.mulf %92, %39 : vector<2x256xf32>
    %94 = arith.addf %91, %93 : vector<2x256xf32>
    %c4_18 = arith.constant 4 : index
    %95 = memref.load %arg2[%c4_18] : memref<98xf32, #tpu.memory_space<smem>>
    %c53 = arith.constant 53 : index
    %96 = memref.load %arg2[%c53] : memref<98xf32, #tpu.memory_space<smem>>
    %97 = vector.broadcast %95 : f32 to vector<2x256xf32>
    %98 = arith.mulf %97, %44 : vector<2x256xf32>
    %99 = arith.addf %94, %98 : vector<2x256xf32>
    %100 = vector.broadcast %96 : f32 to vector<2x256xf32>
    %101 = arith.mulf %100, %46 : vector<2x256xf32>
    %102 = arith.addf %99, %101 : vector<2x256xf32>
    %c5_19 = arith.constant 5 : index
    %103 = memref.load %arg2[%c5_19] : memref<98xf32, #tpu.memory_space<smem>>
    %c54 = arith.constant 54 : index
    %104 = memref.load %arg2[%c54] : memref<98xf32, #tpu.memory_space<smem>>
    %105 = vector.broadcast %103 : f32 to vector<2x256xf32>
    %106 = arith.mulf %105, %51 : vector<2x256xf32>
    %107 = arith.addf %102, %106 : vector<2x256xf32>
    %108 = vector.broadcast %104 : f32 to vector<2x256xf32>
    %109 = arith.mulf %108, %53 : vector<2x256xf32>
    %110 = arith.addf %107, %109 : vector<2x256xf32>
    %c6_20 = arith.constant 6 : index
    %111 = memref.load %arg2[%c6_20] : memref<98xf32, #tpu.memory_space<smem>>
    %c55 = arith.constant 55 : index
    %112 = memref.load %arg2[%c55] : memref<98xf32, #tpu.memory_space<smem>>
    %113 = vector.broadcast %111 : f32 to vector<2x256xf32>
    %114 = arith.mulf %113, %58 : vector<2x256xf32>
    %115 = arith.addf %110, %114 : vector<2x256xf32>
    %116 = vector.broadcast %112 : f32 to vector<2x256xf32>
    %117 = arith.mulf %116, %60 : vector<2x256xf32>
    %118 = arith.addf %115, %117 : vector<2x256xf32>
    %c0_i32_21 = arith.constant 0 : i32
    %119 = arith.sitofp %c0_i32_21 : i32 to f32
    %120 = vector.broadcast %119 : f32 to vector<2x48xf32>
    %121 = tpu.concatenate %120, %118 in 1 : vector<2x48xf32>, vector<2x256xf32> -> vector<2x304xf32>
    %122 = vector.broadcast %119 : f32 to vector<2x48xf32>
    %123 = tpu.concatenate %121, %122 in 1 : vector<2x304xf32>, vector<2x48xf32> -> vector<2x352xf32>
    %124 = vector.extract_strided_slice %123 {offsets = [0, 0], sizes = [2, 256], strides = [1, 1]} : vector<2x352xf32> to vector<2x256xf32>
    %125 = arith.addf %61, %124 : vector<2x256xf32>
    %cst_22 = arith.constant 0.000000e+00 : f32
    %126 = vector.broadcast %cst_22 : f32 to vector<2x256xf32>
    %c7 = arith.constant 7 : index
    %127 = memref.load %arg2[%c7] : memref<98xf32, #tpu.memory_space<smem>>
    %c56 = arith.constant 56 : index
    %128 = memref.load %arg2[%c56] : memref<98xf32, #tpu.memory_space<smem>>
    %129 = vector.broadcast %127 : f32 to vector<2x256xf32>
    %130 = arith.mulf %129, %21 : vector<2x256xf32>
    %131 = arith.addf %126, %130 : vector<2x256xf32>
    %132 = vector.broadcast %128 : f32 to vector<2x256xf32>
    %133 = arith.mulf %132, %23 : vector<2x256xf32>
    %134 = arith.addf %131, %133 : vector<2x256xf32>
    %c8 = arith.constant 8 : index
    %135 = memref.load %arg2[%c8] : memref<98xf32, #tpu.memory_space<smem>>
    %c57 = arith.constant 57 : index
    %136 = memref.load %arg2[%c57] : memref<98xf32, #tpu.memory_space<smem>>
    %137 = vector.broadcast %135 : f32 to vector<2x256xf32>
    %138 = arith.mulf %137, %28 : vector<2x256xf32>
    %139 = arith.addf %134, %138 : vector<2x256xf32>
    %140 = vector.broadcast %136 : f32 to vector<2x256xf32>
    %141 = arith.mulf %140, %30 : vector<2x256xf32>
    %142 = arith.addf %139, %141 : vector<2x256xf32>
    %c9 = arith.constant 9 : index
    %143 = memref.load %arg2[%c9] : memref<98xf32, #tpu.memory_space<smem>>
    %c58 = arith.constant 58 : index
    %144 = memref.load %arg2[%c58] : memref<98xf32, #tpu.memory_space<smem>>
    %145 = vector.broadcast %143 : f32 to vector<2x256xf32>
    %146 = arith.mulf %145, %35 : vector<2x256xf32>
    %147 = arith.addf %142, %146 : vector<2x256xf32>
    %148 = vector.broadcast %144 : f32 to vector<2x256xf32>
    %149 = arith.mulf %148, %37 : vector<2x256xf32>
    %150 = arith.addf %147, %149 : vector<2x256xf32>
    %c10 = arith.constant 10 : index
    %151 = memref.load %arg2[%c10] : memref<98xf32, #tpu.memory_space<smem>>
    %c59 = arith.constant 59 : index
    %152 = memref.load %arg2[%c59] : memref<98xf32, #tpu.memory_space<smem>>
    %153 = vector.broadcast %151 : f32 to vector<2x256xf32>
    %154 = arith.mulf %153, %38 : vector<2x256xf32>
    %155 = arith.addf %150, %154 : vector<2x256xf32>
    %156 = vector.broadcast %152 : f32 to vector<2x256xf32>
    %157 = arith.mulf %156, %39 : vector<2x256xf32>
    %158 = arith.addf %155, %157 : vector<2x256xf32>
    %c11 = arith.constant 11 : index
    %159 = memref.load %arg2[%c11] : memref<98xf32, #tpu.memory_space<smem>>
    %c60 = arith.constant 60 : index
    %160 = memref.load %arg2[%c60] : memref<98xf32, #tpu.memory_space<smem>>
    %161 = vector.broadcast %159 : f32 to vector<2x256xf32>
    %162 = arith.mulf %161, %44 : vector<2x256xf32>
    %163 = arith.addf %158, %162 : vector<2x256xf32>
    %164 = vector.broadcast %160 : f32 to vector<2x256xf32>
    %165 = arith.mulf %164, %46 : vector<2x256xf32>
    %166 = arith.addf %163, %165 : vector<2x256xf32>
    %c12 = arith.constant 12 : index
    %167 = memref.load %arg2[%c12] : memref<98xf32, #tpu.memory_space<smem>>
    %c61 = arith.constant 61 : index
    %168 = memref.load %arg2[%c61] : memref<98xf32, #tpu.memory_space<smem>>
    %169 = vector.broadcast %167 : f32 to vector<2x256xf32>
    %170 = arith.mulf %169, %51 : vector<2x256xf32>
    %171 = arith.addf %166, %170 : vector<2x256xf32>
    %172 = vector.broadcast %168 : f32 to vector<2x256xf32>
    %173 = arith.mulf %172, %53 : vector<2x256xf32>
    %174 = arith.addf %171, %173 : vector<2x256xf32>
    %c13 = arith.constant 13 : index
    %175 = memref.load %arg2[%c13] : memref<98xf32, #tpu.memory_space<smem>>
    %c62 = arith.constant 62 : index
    %176 = memref.load %arg2[%c62] : memref<98xf32, #tpu.memory_space<smem>>
    %177 = vector.broadcast %175 : f32 to vector<2x256xf32>
    %178 = arith.mulf %177, %58 : vector<2x256xf32>
    %179 = arith.addf %174, %178 : vector<2x256xf32>
    %180 = vector.broadcast %176 : f32 to vector<2x256xf32>
    %181 = arith.mulf %180, %60 : vector<2x256xf32>
    %182 = arith.addf %179, %181 : vector<2x256xf32>
    %c0_i32_23 = arith.constant 0 : i32
    %183 = arith.sitofp %c0_i32_23 : i32 to f32
    %184 = vector.broadcast %183 : f32 to vector<2x48xf32>
    %185 = tpu.concatenate %184, %182 in 1 : vector<2x48xf32>, vector<2x256xf32> -> vector<2x304xf32>
    %186 = vector.broadcast %183 : f32 to vector<2x48xf32>
    %187 = tpu.concatenate %185, %186 in 1 : vector<2x304xf32>, vector<2x48xf32> -> vector<2x352xf32>
    %188 = vector.extract_strided_slice %187 {offsets = [0, 16], sizes = [2, 256], strides = [1, 1]} : vector<2x352xf32> to vector<2x256xf32>
    %189 = arith.addf %125, %188 : vector<2x256xf32>
    %cst_24 = arith.constant 0.000000e+00 : f32
    %190 = vector.broadcast %cst_24 : f32 to vector<2x256xf32>
    %c14 = arith.constant 14 : index
    %191 = memref.load %arg2[%c14] : memref<98xf32, #tpu.memory_space<smem>>
    %c63 = arith.constant 63 : index
    %192 = memref.load %arg2[%c63] : memref<98xf32, #tpu.memory_space<smem>>
    %193 = vector.broadcast %191 : f32 to vector<2x256xf32>
    %194 = arith.mulf %193, %21 : vector<2x256xf32>
    %195 = arith.addf %190, %194 : vector<2x256xf32>
    %196 = vector.broadcast %192 : f32 to vector<2x256xf32>
    %197 = arith.mulf %196, %23 : vector<2x256xf32>
    %198 = arith.addf %195, %197 : vector<2x256xf32>
    %c15 = arith.constant 15 : index
    %199 = memref.load %arg2[%c15] : memref<98xf32, #tpu.memory_space<smem>>
    %c64 = arith.constant 64 : index
    %200 = memref.load %arg2[%c64] : memref<98xf32, #tpu.memory_space<smem>>
    %201 = vector.broadcast %199 : f32 to vector<2x256xf32>
    %202 = arith.mulf %201, %28 : vector<2x256xf32>
    %203 = arith.addf %198, %202 : vector<2x256xf32>
    %204 = vector.broadcast %200 : f32 to vector<2x256xf32>
    %205 = arith.mulf %204, %30 : vector<2x256xf32>
    %206 = arith.addf %203, %205 : vector<2x256xf32>
    %c16 = arith.constant 16 : index
    %207 = memref.load %arg2[%c16] : memref<98xf32, #tpu.memory_space<smem>>
    %c65 = arith.constant 65 : index
    %208 = memref.load %arg2[%c65] : memref<98xf32, #tpu.memory_space<smem>>
    %209 = vector.broadcast %207 : f32 to vector<2x256xf32>
    %210 = arith.mulf %209, %35 : vector<2x256xf32>
    %211 = arith.addf %206, %210 : vector<2x256xf32>
    %212 = vector.broadcast %208 : f32 to vector<2x256xf32>
    %213 = arith.mulf %212, %37 : vector<2x256xf32>
    %214 = arith.addf %211, %213 : vector<2x256xf32>
    %c17 = arith.constant 17 : index
    %215 = memref.load %arg2[%c17] : memref<98xf32, #tpu.memory_space<smem>>
    %c66 = arith.constant 66 : index
    %216 = memref.load %arg2[%c66] : memref<98xf32, #tpu.memory_space<smem>>
    %217 = vector.broadcast %215 : f32 to vector<2x256xf32>
    %218 = arith.mulf %217, %38 : vector<2x256xf32>
    %219 = arith.addf %214, %218 : vector<2x256xf32>
    %220 = vector.broadcast %216 : f32 to vector<2x256xf32>
    %221 = arith.mulf %220, %39 : vector<2x256xf32>
    %222 = arith.addf %219, %221 : vector<2x256xf32>
    %c18 = arith.constant 18 : index
    %223 = memref.load %arg2[%c18] : memref<98xf32, #tpu.memory_space<smem>>
    %c67 = arith.constant 67 : index
    %224 = memref.load %arg2[%c67] : memref<98xf32, #tpu.memory_space<smem>>
    %225 = vector.broadcast %223 : f32 to vector<2x256xf32>
    %226 = arith.mulf %225, %44 : vector<2x256xf32>
    %227 = arith.addf %222, %226 : vector<2x256xf32>
    %228 = vector.broadcast %224 : f32 to vector<2x256xf32>
    %229 = arith.mulf %228, %46 : vector<2x256xf32>
    %230 = arith.addf %227, %229 : vector<2x256xf32>
    %c19 = arith.constant 19 : index
    %231 = memref.load %arg2[%c19] : memref<98xf32, #tpu.memory_space<smem>>
    %c68 = arith.constant 68 : index
    %232 = memref.load %arg2[%c68] : memref<98xf32, #tpu.memory_space<smem>>
    %233 = vector.broadcast %231 : f32 to vector<2x256xf32>
    %234 = arith.mulf %233, %51 : vector<2x256xf32>
    %235 = arith.addf %230, %234 : vector<2x256xf32>
    %236 = vector.broadcast %232 : f32 to vector<2x256xf32>
    %237 = arith.mulf %236, %53 : vector<2x256xf32>
    %238 = arith.addf %235, %237 : vector<2x256xf32>
    %c20 = arith.constant 20 : index
    %239 = memref.load %arg2[%c20] : memref<98xf32, #tpu.memory_space<smem>>
    %c69 = arith.constant 69 : index
    %240 = memref.load %arg2[%c69] : memref<98xf32, #tpu.memory_space<smem>>
    %241 = vector.broadcast %239 : f32 to vector<2x256xf32>
    %242 = arith.mulf %241, %58 : vector<2x256xf32>
    %243 = arith.addf %238, %242 : vector<2x256xf32>
    %244 = vector.broadcast %240 : f32 to vector<2x256xf32>
    %245 = arith.mulf %244, %60 : vector<2x256xf32>
    %246 = arith.addf %243, %245 : vector<2x256xf32>
    %c0_i32_25 = arith.constant 0 : i32
    %247 = arith.sitofp %c0_i32_25 : i32 to f32
    %248 = vector.broadcast %247 : f32 to vector<2x48xf32>
    %249 = tpu.concatenate %248, %246 in 1 : vector<2x48xf32>, vector<2x256xf32> -> vector<2x304xf32>
    %250 = vector.broadcast %247 : f32 to vector<2x48xf32>
    %251 = tpu.concatenate %249, %250 in 1 : vector<2x304xf32>, vector<2x48xf32> -> vector<2x352xf32>
    %252 = vector.extract_strided_slice %251 {offsets = [0, 32], sizes = [2, 256], strides = [1, 1]} : vector<2x352xf32> to vector<2x256xf32>
    %253 = arith.addf %189, %252 : vector<2x256xf32>
    %cst_26 = arith.constant 0.000000e+00 : f32
    %254 = vector.broadcast %cst_26 : f32 to vector<2x256xf32>
    %c21 = arith.constant 21 : index
    %255 = memref.load %arg2[%c21] : memref<98xf32, #tpu.memory_space<smem>>
    %c70 = arith.constant 70 : index
    %256 = memref.load %arg2[%c70] : memref<98xf32, #tpu.memory_space<smem>>
    %257 = vector.broadcast %255 : f32 to vector<2x256xf32>
    %258 = arith.mulf %257, %21 : vector<2x256xf32>
    %259 = arith.addf %254, %258 : vector<2x256xf32>
    %260 = vector.broadcast %256 : f32 to vector<2x256xf32>
    %261 = arith.mulf %260, %23 : vector<2x256xf32>
    %262 = arith.addf %259, %261 : vector<2x256xf32>
    %c22 = arith.constant 22 : index
    %263 = memref.load %arg2[%c22] : memref<98xf32, #tpu.memory_space<smem>>
    %c71 = arith.constant 71 : index
    %264 = memref.load %arg2[%c71] : memref<98xf32, #tpu.memory_space<smem>>
    %265 = vector.broadcast %263 : f32 to vector<2x256xf32>
    %266 = arith.mulf %265, %28 : vector<2x256xf32>
    %267 = arith.addf %262, %266 : vector<2x256xf32>
    %268 = vector.broadcast %264 : f32 to vector<2x256xf32>
    %269 = arith.mulf %268, %30 : vector<2x256xf32>
    %270 = arith.addf %267, %269 : vector<2x256xf32>
    %c23 = arith.constant 23 : index
    %271 = memref.load %arg2[%c23] : memref<98xf32, #tpu.memory_space<smem>>
    %c72 = arith.constant 72 : index
    %272 = memref.load %arg2[%c72] : memref<98xf32, #tpu.memory_space<smem>>
    %273 = vector.broadcast %271 : f32 to vector<2x256xf32>
    %274 = arith.mulf %273, %35 : vector<2x256xf32>
    %275 = arith.addf %270, %274 : vector<2x256xf32>
    %276 = vector.broadcast %272 : f32 to vector<2x256xf32>
    %277 = arith.mulf %276, %37 : vector<2x256xf32>
    %278 = arith.addf %275, %277 : vector<2x256xf32>
    %c24 = arith.constant 24 : index
    %279 = memref.load %arg2[%c24] : memref<98xf32, #tpu.memory_space<smem>>
    %c73 = arith.constant 73 : index
    %280 = memref.load %arg2[%c73] : memref<98xf32, #tpu.memory_space<smem>>
    %281 = vector.broadcast %279 : f32 to vector<2x256xf32>
    %282 = arith.mulf %281, %38 : vector<2x256xf32>
    %283 = arith.addf %278, %282 : vector<2x256xf32>
    %284 = vector.broadcast %280 : f32 to vector<2x256xf32>
    %285 = arith.mulf %284, %39 : vector<2x256xf32>
    %286 = arith.addf %283, %285 : vector<2x256xf32>
    %c25 = arith.constant 25 : index
    %287 = memref.load %arg2[%c25] : memref<98xf32, #tpu.memory_space<smem>>
    %c74 = arith.constant 74 : index
    %288 = memref.load %arg2[%c74] : memref<98xf32, #tpu.memory_space<smem>>
    %289 = vector.broadcast %287 : f32 to vector<2x256xf32>
    %290 = arith.mulf %289, %44 : vector<2x256xf32>
    %291 = arith.addf %286, %290 : vector<2x256xf32>
    %292 = vector.broadcast %288 : f32 to vector<2x256xf32>
    %293 = arith.mulf %292, %46 : vector<2x256xf32>
    %294 = arith.addf %291, %293 : vector<2x256xf32>
    %c26 = arith.constant 26 : index
    %295 = memref.load %arg2[%c26] : memref<98xf32, #tpu.memory_space<smem>>
    %c75 = arith.constant 75 : index
    %296 = memref.load %arg2[%c75] : memref<98xf32, #tpu.memory_space<smem>>
    %297 = vector.broadcast %295 : f32 to vector<2x256xf32>
    %298 = arith.mulf %297, %51 : vector<2x256xf32>
    %299 = arith.addf %294, %298 : vector<2x256xf32>
    %300 = vector.broadcast %296 : f32 to vector<2x256xf32>
    %301 = arith.mulf %300, %53 : vector<2x256xf32>
    %302 = arith.addf %299, %301 : vector<2x256xf32>
    %c27 = arith.constant 27 : index
    %303 = memref.load %arg2[%c27] : memref<98xf32, #tpu.memory_space<smem>>
    %c76 = arith.constant 76 : index
    %304 = memref.load %arg2[%c76] : memref<98xf32, #tpu.memory_space<smem>>
    %305 = vector.broadcast %303 : f32 to vector<2x256xf32>
    %306 = arith.mulf %305, %58 : vector<2x256xf32>
    %307 = arith.addf %302, %306 : vector<2x256xf32>
    %308 = vector.broadcast %304 : f32 to vector<2x256xf32>
    %309 = arith.mulf %308, %60 : vector<2x256xf32>
    %310 = arith.addf %307, %309 : vector<2x256xf32>
    %311 = arith.addf %253, %310 : vector<2x256xf32>
    %cst_27 = arith.constant 0.000000e+00 : f32
    %312 = vector.broadcast %cst_27 : f32 to vector<2x256xf32>
    %c28 = arith.constant 28 : index
    %313 = memref.load %arg2[%c28] : memref<98xf32, #tpu.memory_space<smem>>
    %c77 = arith.constant 77 : index
    %314 = memref.load %arg2[%c77] : memref<98xf32, #tpu.memory_space<smem>>
    %315 = vector.broadcast %313 : f32 to vector<2x256xf32>
    %316 = arith.mulf %315, %21 : vector<2x256xf32>
    %317 = arith.addf %312, %316 : vector<2x256xf32>
    %318 = vector.broadcast %314 : f32 to vector<2x256xf32>
    %319 = arith.mulf %318, %23 : vector<2x256xf32>
    %320 = arith.addf %317, %319 : vector<2x256xf32>
    %c29 = arith.constant 29 : index
    %321 = memref.load %arg2[%c29] : memref<98xf32, #tpu.memory_space<smem>>
    %c78 = arith.constant 78 : index
    %322 = memref.load %arg2[%c78] : memref<98xf32, #tpu.memory_space<smem>>
    %323 = vector.broadcast %321 : f32 to vector<2x256xf32>
    %324 = arith.mulf %323, %28 : vector<2x256xf32>
    %325 = arith.addf %320, %324 : vector<2x256xf32>
    %326 = vector.broadcast %322 : f32 to vector<2x256xf32>
    %327 = arith.mulf %326, %30 : vector<2x256xf32>
    %328 = arith.addf %325, %327 : vector<2x256xf32>
    %c30 = arith.constant 30 : index
    %329 = memref.load %arg2[%c30] : memref<98xf32, #tpu.memory_space<smem>>
    %c79 = arith.constant 79 : index
    %330 = memref.load %arg2[%c79] : memref<98xf32, #tpu.memory_space<smem>>
    %331 = vector.broadcast %329 : f32 to vector<2x256xf32>
    %332 = arith.mulf %331, %35 : vector<2x256xf32>
    %333 = arith.addf %328, %332 : vector<2x256xf32>
    %334 = vector.broadcast %330 : f32 to vector<2x256xf32>
    %335 = arith.mulf %334, %37 : vector<2x256xf32>
    %336 = arith.addf %333, %335 : vector<2x256xf32>
    %c31 = arith.constant 31 : index
    %337 = memref.load %arg2[%c31] : memref<98xf32, #tpu.memory_space<smem>>
    %c80 = arith.constant 80 : index
    %338 = memref.load %arg2[%c80] : memref<98xf32, #tpu.memory_space<smem>>
    %339 = vector.broadcast %337 : f32 to vector<2x256xf32>
    %340 = arith.mulf %339, %38 : vector<2x256xf32>
    %341 = arith.addf %336, %340 : vector<2x256xf32>
    %342 = vector.broadcast %338 : f32 to vector<2x256xf32>
    %343 = arith.mulf %342, %39 : vector<2x256xf32>
    %344 = arith.addf %341, %343 : vector<2x256xf32>
    %c32 = arith.constant 32 : index
    %345 = memref.load %arg2[%c32] : memref<98xf32, #tpu.memory_space<smem>>
    %c81 = arith.constant 81 : index
    %346 = memref.load %arg2[%c81] : memref<98xf32, #tpu.memory_space<smem>>
    %347 = vector.broadcast %345 : f32 to vector<2x256xf32>
    %348 = arith.mulf %347, %44 : vector<2x256xf32>
    %349 = arith.addf %344, %348 : vector<2x256xf32>
    %350 = vector.broadcast %346 : f32 to vector<2x256xf32>
    %351 = arith.mulf %350, %46 : vector<2x256xf32>
    %352 = arith.addf %349, %351 : vector<2x256xf32>
    %c33 = arith.constant 33 : index
    %353 = memref.load %arg2[%c33] : memref<98xf32, #tpu.memory_space<smem>>
    %c82 = arith.constant 82 : index
    %354 = memref.load %arg2[%c82] : memref<98xf32, #tpu.memory_space<smem>>
    %355 = vector.broadcast %353 : f32 to vector<2x256xf32>
    %356 = arith.mulf %355, %51 : vector<2x256xf32>
    %357 = arith.addf %352, %356 : vector<2x256xf32>
    %358 = vector.broadcast %354 : f32 to vector<2x256xf32>
    %359 = arith.mulf %358, %53 : vector<2x256xf32>
    %360 = arith.addf %357, %359 : vector<2x256xf32>
    %c34 = arith.constant 34 : index
    %361 = memref.load %arg2[%c34] : memref<98xf32, #tpu.memory_space<smem>>
    %c83 = arith.constant 83 : index
    %362 = memref.load %arg2[%c83] : memref<98xf32, #tpu.memory_space<smem>>
    %363 = vector.broadcast %361 : f32 to vector<2x256xf32>
    %364 = arith.mulf %363, %58 : vector<2x256xf32>
    %365 = arith.addf %360, %364 : vector<2x256xf32>
    %366 = vector.broadcast %362 : f32 to vector<2x256xf32>
    %367 = arith.mulf %366, %60 : vector<2x256xf32>
    %368 = arith.addf %365, %367 : vector<2x256xf32>
    %c0_i32_28 = arith.constant 0 : i32
    %369 = arith.sitofp %c0_i32_28 : i32 to f32
    %370 = vector.broadcast %369 : f32 to vector<2x48xf32>
    %371 = tpu.concatenate %370, %368 in 1 : vector<2x48xf32>, vector<2x256xf32> -> vector<2x304xf32>
    %372 = vector.broadcast %369 : f32 to vector<2x48xf32>
    %373 = tpu.concatenate %371, %372 in 1 : vector<2x304xf32>, vector<2x48xf32> -> vector<2x352xf32>
    %374 = vector.extract_strided_slice %373 {offsets = [0, 64], sizes = [2, 256], strides = [1, 1]} : vector<2x352xf32> to vector<2x256xf32>
    %375 = arith.addf %311, %374 : vector<2x256xf32>
    %cst_29 = arith.constant 0.000000e+00 : f32
    %376 = vector.broadcast %cst_29 : f32 to vector<2x256xf32>
    %c35 = arith.constant 35 : index
    %377 = memref.load %arg2[%c35] : memref<98xf32, #tpu.memory_space<smem>>
    %c84 = arith.constant 84 : index
    %378 = memref.load %arg2[%c84] : memref<98xf32, #tpu.memory_space<smem>>
    %379 = vector.broadcast %377 : f32 to vector<2x256xf32>
    %380 = arith.mulf %379, %21 : vector<2x256xf32>
    %381 = arith.addf %376, %380 : vector<2x256xf32>
    %382 = vector.broadcast %378 : f32 to vector<2x256xf32>
    %383 = arith.mulf %382, %23 : vector<2x256xf32>
    %384 = arith.addf %381, %383 : vector<2x256xf32>
    %c36 = arith.constant 36 : index
    %385 = memref.load %arg2[%c36] : memref<98xf32, #tpu.memory_space<smem>>
    %c85 = arith.constant 85 : index
    %386 = memref.load %arg2[%c85] : memref<98xf32, #tpu.memory_space<smem>>
    %387 = vector.broadcast %385 : f32 to vector<2x256xf32>
    %388 = arith.mulf %387, %28 : vector<2x256xf32>
    %389 = arith.addf %384, %388 : vector<2x256xf32>
    %390 = vector.broadcast %386 : f32 to vector<2x256xf32>
    %391 = arith.mulf %390, %30 : vector<2x256xf32>
    %392 = arith.addf %389, %391 : vector<2x256xf32>
    %c37 = arith.constant 37 : index
    %393 = memref.load %arg2[%c37] : memref<98xf32, #tpu.memory_space<smem>>
    %c86 = arith.constant 86 : index
    %394 = memref.load %arg2[%c86] : memref<98xf32, #tpu.memory_space<smem>>
    %395 = vector.broadcast %393 : f32 to vector<2x256xf32>
    %396 = arith.mulf %395, %35 : vector<2x256xf32>
    %397 = arith.addf %392, %396 : vector<2x256xf32>
    %398 = vector.broadcast %394 : f32 to vector<2x256xf32>
    %399 = arith.mulf %398, %37 : vector<2x256xf32>
    %400 = arith.addf %397, %399 : vector<2x256xf32>
    %c38 = arith.constant 38 : index
    %401 = memref.load %arg2[%c38] : memref<98xf32, #tpu.memory_space<smem>>
    %c87 = arith.constant 87 : index
    %402 = memref.load %arg2[%c87] : memref<98xf32, #tpu.memory_space<smem>>
    %403 = vector.broadcast %401 : f32 to vector<2x256xf32>
    %404 = arith.mulf %403, %38 : vector<2x256xf32>
    %405 = arith.addf %400, %404 : vector<2x256xf32>
    %406 = vector.broadcast %402 : f32 to vector<2x256xf32>
    %407 = arith.mulf %406, %39 : vector<2x256xf32>
    %408 = arith.addf %405, %407 : vector<2x256xf32>
    %c39 = arith.constant 39 : index
    %409 = memref.load %arg2[%c39] : memref<98xf32, #tpu.memory_space<smem>>
    %c88 = arith.constant 88 : index
    %410 = memref.load %arg2[%c88] : memref<98xf32, #tpu.memory_space<smem>>
    %411 = vector.broadcast %409 : f32 to vector<2x256xf32>
    %412 = arith.mulf %411, %44 : vector<2x256xf32>
    %413 = arith.addf %408, %412 : vector<2x256xf32>
    %414 = vector.broadcast %410 : f32 to vector<2x256xf32>
    %415 = arith.mulf %414, %46 : vector<2x256xf32>
    %416 = arith.addf %413, %415 : vector<2x256xf32>
    %c40 = arith.constant 40 : index
    %417 = memref.load %arg2[%c40] : memref<98xf32, #tpu.memory_space<smem>>
    %c89 = arith.constant 89 : index
    %418 = memref.load %arg2[%c89] : memref<98xf32, #tpu.memory_space<smem>>
    %419 = vector.broadcast %417 : f32 to vector<2x256xf32>
    %420 = arith.mulf %419, %51 : vector<2x256xf32>
    %421 = arith.addf %416, %420 : vector<2x256xf32>
    %422 = vector.broadcast %418 : f32 to vector<2x256xf32>
    %423 = arith.mulf %422, %53 : vector<2x256xf32>
    %424 = arith.addf %421, %423 : vector<2x256xf32>
    %c41 = arith.constant 41 : index
    %425 = memref.load %arg2[%c41] : memref<98xf32, #tpu.memory_space<smem>>
    %c90 = arith.constant 90 : index
    %426 = memref.load %arg2[%c90] : memref<98xf32, #tpu.memory_space<smem>>
    %427 = vector.broadcast %425 : f32 to vector<2x256xf32>
    %428 = arith.mulf %427, %58 : vector<2x256xf32>
    %429 = arith.addf %424, %428 : vector<2x256xf32>
    %430 = vector.broadcast %426 : f32 to vector<2x256xf32>
    %431 = arith.mulf %430, %60 : vector<2x256xf32>
    %432 = arith.addf %429, %431 : vector<2x256xf32>
    %c0_i32_30 = arith.constant 0 : i32
    %433 = arith.sitofp %c0_i32_30 : i32 to f32
    %434 = vector.broadcast %433 : f32 to vector<2x48xf32>
    %435 = tpu.concatenate %434, %432 in 1 : vector<2x48xf32>, vector<2x256xf32> -> vector<2x304xf32>
    %436 = vector.broadcast %433 : f32 to vector<2x48xf32>
    %437 = tpu.concatenate %435, %436 in 1 : vector<2x304xf32>, vector<2x48xf32> -> vector<2x352xf32>
    %438 = vector.extract_strided_slice %437 {offsets = [0, 80], sizes = [2, 256], strides = [1, 1]} : vector<2x352xf32> to vector<2x256xf32>
    %439 = arith.addf %375, %438 : vector<2x256xf32>
    %cst_31 = arith.constant 0.000000e+00 : f32
    %440 = vector.broadcast %cst_31 : f32 to vector<2x256xf32>
    %c42 = arith.constant 42 : index
    %441 = memref.load %arg2[%c42] : memref<98xf32, #tpu.memory_space<smem>>
    %c91 = arith.constant 91 : index
    %442 = memref.load %arg2[%c91] : memref<98xf32, #tpu.memory_space<smem>>
    %443 = vector.broadcast %441 : f32 to vector<2x256xf32>
    %444 = arith.mulf %443, %21 : vector<2x256xf32>
    %445 = arith.addf %440, %444 : vector<2x256xf32>
    %446 = vector.broadcast %442 : f32 to vector<2x256xf32>
    %447 = arith.mulf %446, %23 : vector<2x256xf32>
    %448 = arith.addf %445, %447 : vector<2x256xf32>
    %c43 = arith.constant 43 : index
    %449 = memref.load %arg2[%c43] : memref<98xf32, #tpu.memory_space<smem>>
    %c92 = arith.constant 92 : index
    %450 = memref.load %arg2[%c92] : memref<98xf32, #tpu.memory_space<smem>>
    %451 = vector.broadcast %449 : f32 to vector<2x256xf32>
    %452 = arith.mulf %451, %28 : vector<2x256xf32>
    %453 = arith.addf %448, %452 : vector<2x256xf32>
    %454 = vector.broadcast %450 : f32 to vector<2x256xf32>
    %455 = arith.mulf %454, %30 : vector<2x256xf32>
    %456 = arith.addf %453, %455 : vector<2x256xf32>
    %c44 = arith.constant 44 : index
    %457 = memref.load %arg2[%c44] : memref<98xf32, #tpu.memory_space<smem>>
    %c93 = arith.constant 93 : index
    %458 = memref.load %arg2[%c93] : memref<98xf32, #tpu.memory_space<smem>>
    %459 = vector.broadcast %457 : f32 to vector<2x256xf32>
    %460 = arith.mulf %459, %35 : vector<2x256xf32>
    %461 = arith.addf %456, %460 : vector<2x256xf32>
    %462 = vector.broadcast %458 : f32 to vector<2x256xf32>
    %463 = arith.mulf %462, %37 : vector<2x256xf32>
    %464 = arith.addf %461, %463 : vector<2x256xf32>
    %c45 = arith.constant 45 : index
    %465 = memref.load %arg2[%c45] : memref<98xf32, #tpu.memory_space<smem>>
    %c94 = arith.constant 94 : index
    %466 = memref.load %arg2[%c94] : memref<98xf32, #tpu.memory_space<smem>>
    %467 = vector.broadcast %465 : f32 to vector<2x256xf32>
    %468 = arith.mulf %467, %38 : vector<2x256xf32>
    %469 = arith.addf %464, %468 : vector<2x256xf32>
    %470 = vector.broadcast %466 : f32 to vector<2x256xf32>
    %471 = arith.mulf %470, %39 : vector<2x256xf32>
    %472 = arith.addf %469, %471 : vector<2x256xf32>
    %c46 = arith.constant 46 : index
    %473 = memref.load %arg2[%c46] : memref<98xf32, #tpu.memory_space<smem>>
    %c95 = arith.constant 95 : index
    %474 = memref.load %arg2[%c95] : memref<98xf32, #tpu.memory_space<smem>>
    %475 = vector.broadcast %473 : f32 to vector<2x256xf32>
    %476 = arith.mulf %475, %44 : vector<2x256xf32>
    %477 = arith.addf %472, %476 : vector<2x256xf32>
    %478 = vector.broadcast %474 : f32 to vector<2x256xf32>
    %479 = arith.mulf %478, %46 : vector<2x256xf32>
    %480 = arith.addf %477, %479 : vector<2x256xf32>
    %c47 = arith.constant 47 : index
    %481 = memref.load %arg2[%c47] : memref<98xf32, #tpu.memory_space<smem>>
    %c96 = arith.constant 96 : index
    %482 = memref.load %arg2[%c96] : memref<98xf32, #tpu.memory_space<smem>>
    %483 = vector.broadcast %481 : f32 to vector<2x256xf32>
    %484 = arith.mulf %483, %51 : vector<2x256xf32>
    %485 = arith.addf %480, %484 : vector<2x256xf32>
    %486 = vector.broadcast %482 : f32 to vector<2x256xf32>
    %487 = arith.mulf %486, %53 : vector<2x256xf32>
    %488 = arith.addf %485, %487 : vector<2x256xf32>
    %c48 = arith.constant 48 : index
    %489 = memref.load %arg2[%c48] : memref<98xf32, #tpu.memory_space<smem>>
    %c97 = arith.constant 97 : index
    %490 = memref.load %arg2[%c97] : memref<98xf32, #tpu.memory_space<smem>>
    %491 = vector.broadcast %489 : f32 to vector<2x256xf32>
    %492 = arith.mulf %491, %58 : vector<2x256xf32>
    %493 = arith.addf %488, %492 : vector<2x256xf32>
    %494 = vector.broadcast %490 : f32 to vector<2x256xf32>
    %495 = arith.mulf %494, %60 : vector<2x256xf32>
    %496 = arith.addf %493, %495 : vector<2x256xf32>
    %c0_i32_32 = arith.constant 0 : i32
    %497 = arith.sitofp %c0_i32_32 : i32 to f32
    %498 = vector.broadcast %497 : f32 to vector<2x48xf32>
    %499 = tpu.concatenate %498, %496 in 1 : vector<2x48xf32>, vector<2x256xf32> -> vector<2x304xf32>
    %500 = vector.broadcast %497 : f32 to vector<2x48xf32>
    %501 = tpu.concatenate %499, %500 in 1 : vector<2x304xf32>, vector<2x48xf32> -> vector<2x352xf32>
    %502 = vector.extract_strided_slice %501 {offsets = [0, 96], sizes = [2, 256], strides = [1, 1]} : vector<2x352xf32> to vector<2x256xf32>
    %503 = arith.addf %439, %502 : vector<2x256xf32>
    %cst_33 = arith.constant 0.000000e+00 : f32
    %504 = vector.broadcast %cst_33 : f32 to vector<2x256xf32>
    %505 = arith.subf %504, %503 : vector<2x256xf32>
    %506 = math.exp %505 : vector<2x256xf32>
    %cst_34 = arith.constant 1.000000e+00 : f32
    %507 = vector.broadcast %cst_34 : f32 to vector<2x256xf32>
    %508 = arith.addf %507, %506 : vector<2x256xf32>
    %509 = tpu.reciprocal %508 : vector<2x256xf32> -> vector<2x256xf32>
    %c0_35 = arith.constant 0 : index
    %c0_36 = arith.constant 0 : index
    %c0_37 = arith.constant 0 : index
    %510 = vector.load %arg4[%c0_35, %c0_36, %c0_37] : memref<2x1x256xf32, #tpu.memory_space<vmem>>, vector<2x1x256xf32>
    %511 = vector.shape_cast %510 : vector<2x1x256xf32> to vector<2x256xf32>
    %512 = vector.shape_cast %509 : vector<2x256xf32> to vector<2x1x256xf32>
    tpu.vector_store %arg4[%c0_35, %c0_36, %c0_37], %512 {strides = array<i32>} : memref<2x1x256xf32, #tpu.memory_space<vmem>>, vector<2x1x256xf32>,
    return
  }
  func.func @transform_0(%arg0: i32) -> (i32, i32, i32) {
    %c0_i32 = arith.constant 0 : i32
    %c0_i32_0 = arith.constant 0 : i32
    %c0_i32_1 = arith.constant 0 : i32
    return %arg0, %c0_i32, %c0_i32_0 : i32, i32, i32
  }
  func.func @transform_1(%arg0: i32) -> i32 {
    %c0_i32 = arith.constant 0 : i32
    %c0_i32_0 = arith.constant 0 : i32
    return %c0_i32 : i32
  }
  func.func @transform_2(%arg0: i32) -> (i32, i32) {
    %c0_i32 = arith.constant 0 : i32
    %c0_i32_0 = arith.constant 0 : i32
    %c0_i32_1 = arith.constant 0 : i32
    return %c0_i32, %c0_i32_0 : i32, i32
  }
  func.func @transform_3(%arg0: i32) -> (i32, i32, i32) {
    %c0_i32 = arith.constant 0 : i32
    %c0_i32_0 = arith.constant 0 : i32
    %c0_i32_1 = arith.constant 0 : i32
    return %arg0, %c0_i32, %c0_i32_0 : i32, i32, i32
  }
}

</mosaic_0001>

<llo_original>
// kernel: tpu_custom_call.1
$region0: #{tpu_custom_call.1}
  #allocation0 [shape = 'u32[]', space=smem, size = 0x4, offset = 0x4, fixed_abs, tag = 'smem constant byte address 0x4 - core index']
  #allocation1 [shape = 'u32[72,128]{1,0:T(1,128)}', space=vmem, size = 0x9000, scoped, tag = 'internal scratch']
  %s0 = inlined_call_operand.hbm [shape: f32[2,4,256], index: 0, kind: input, shape index: {}]
  %s1 = inlined_call_operand.hbm [shape: f32[98], index: 1, kind: input, shape index: {}]
  %s2 = inlined_call_operand.hbm [shape: f32[8,256], index: 2, kind: input, shape index: {}]
  %s3 = inlined_call_operand.hbm [shape: f32[2,1,256], index: 3, kind: output, shape index: {}]
  %s4 = sld [smem:[#allocation0]]
  $region34: #{tpu_custom_call.1} parent=0
    _
  %s6 = ssub.s32 1, %s4
  %s7 = scalar_select 0, %s6, %s4
  $region1: #{tpu_custom_call.1} parent=0
    #allocation2 [shape = 'u8[8192]{0}', space=vmem, size = 0x2000, scoped, tag = 'input window, operand 0, single buffered']
    #allocation3 [shape = 's32[1]{0}', space=sflag, size = 0x4, scoped, tag = 'scoped memory for tpu_custom_call.1']
    #allocation4 [shape = 's32[1]{0}', space=sflag, size = 0x4, scoped, tag = 'scoped memory for tpu_custom_call.1']
    #allocation5 [shape = 's32[1]{0}', space=sflag, size = 0x4, scoped, tag = 'scoped memory for tpu_custom_call.1']
    #allocation6 [shape = 'u8[512]{0}', space=smem, size = 0x200, scoped, tag = 'input window, operand 1, single buffered']
    #allocation7 [shape = 'u8[8192]{0}', space=vmem, size = 0x2000, scoped, tag = 'input window, operand 2, single buffered']
    #allocation8 [shape = 's32[1]{0}', space=sflag, size = 0x4, scoped, tag = 'scoped memory for tpu_custom_call.1']
    #allocation9 [shape = 'u8[2048]{0}', space=vmem, size = 0x800, scoped, tag = 'output window, operand 0, single buffered']
    %8 = vsyncpa [#allocation3], 0
    %9 = vsyncpa [#allocation5], 0
    %10 = vsyncpa [#allocation8], 0
    %11 = vsyncpa [#allocation4], 0
    // Predicated region
    $region2: #{tpu_custom_call.1} parent=1 // pred_check
      _
    $region3: #{tpu_custom_call.1} parent=1 // pred_check_branch
      %13 = sbr.rel (0) target = $region5
    $region4: #{tpu_custom_call.1} parent=1 // pred_region
      %15 = vsyncadd [#allocation3], 0
      %s16 = sshll.u32 %s0, 4
      %s17 = int_to_ptr.hbm [resolvable:$true] %s16
      %s18 = sshll.u32 [#allocation2], 4
      %s19 = int_to_ptr.vmem [resolvable:$true] %s18
      %24 = dma.hbm_to_vmem [thread:$0]  %s17, 256, %s19, [#allocation3], 128, 128, 8
    $region5: #{tpu_custom_call.1} parent=1 // pred_fallthru
      _
    // Predicated region
    $region6: #{tpu_custom_call.1} parent=1 // pred_check
      _
    $region7: #{tpu_custom_call.1} parent=1 // pred_check_branch
      %26 = sbr.rel (0) target = $region9
    $region8: #{tpu_custom_call.1} parent=1 // pred_region
      %28 = vsyncadd [#allocation5], 0
      %s30 = sshll.u32 %s1, 4
      %s31 = int_to_ptr.hbm [resolvable:$true] %s30
      %33 = dma.hbm_to_smem %s31, 16, [#allocation6], [#allocation5]
    $region9: #{tpu_custom_call.1} parent=1 // pred_fallthru
      _
    // Predicated region
    $region10: #{tpu_custom_call.1} parent=1 // pred_check
      _
    $region11: #{tpu_custom_call.1} parent=1 // pred_check_branch
      %35 = sbr.rel (0) target = $region13
    $region12: #{tpu_custom_call.1} parent=1 // pred_region
      %37 = vsyncadd [#allocation8], 0
      %s39 = sshll.u32 %s2, 4
      %s40 = int_to_ptr.hbm [resolvable:$true] %s39
      %s41 = sshll.u32 [#allocation7], 4
      %s42 = int_to_ptr.vmem [resolvable:$true] %s41
      %44 = dma.hbm_to_vmem [thread:$0]  %s40, 256, %s42, [#allocation8]
    $region13: #{tpu_custom_call.1} parent=1 // pred_fallthru
      _
    // Predicated region
    $region14: #{tpu_custom_call.1} parent=1 // pred_check
      _
    $region15: #{tpu_custom_call.1} parent=1 // pred_check_branch
      %46 = sbr.rel (0) target = $region17
    $region16: #{tpu_custom_call.1} parent=1 // pred_region
      %48 = dma.done [#allocation3], 256
    $region17: #{tpu_custom_call.1} parent=1 // pred_fallthru
      _
    // Predicated region
    $region18: #{tpu_custom_call.1} parent=1 // pred_check
      _
    $region19: #{tpu_custom_call.1} parent=1 // pred_check_branch
      %50 = sbr.rel (0) target = $region21
    $region20: #{tpu_custom_call.1} parent=1 // pred_region
      %52 = dma.done [#allocation5], 16
    $region21: #{tpu_custom_call.1} parent=1 // pred_fallthru
      _
    // Predicated region
    $region22: #{tpu_custom_call.1} parent=1 // pred_check
      _
    $region23: #{tpu_custom_call.1} parent=1 // pred_check_branch
      %54 = sbr.rel (0) target = $region25
    $region24: #{tpu_custom_call.1} parent=1 // pred_region
      %56 = dma.done [#allocation8], 256
    $region25: #{tpu_custom_call.1} parent=1 // pred_fallthru
      _
    %57 = sfence
    %v58 = vld [vmem:[#allocation2] sm:$0xff]
    %v59 = vld [vmem:[#allocation2 + $0x8] sm:$0xff]
    %62 = vst [vmem:[#allocation1] ss:$2 sm:$0xff] %v58
    %v63 = vld.sshfl [vmem:[#allocation1] sm:$0xff pattern:$0x75316420]
    %v64 = vld.sshfl [vmem:[#allocation1 + $0x8] sm:$0xff pattern:$0x75316420]
    %s65 = scalar_lea.vmem [#allocation1], 16
    %66 = vst [vmem:[%s65] ss:$2 sm:$0xff] %v59
    %v67 = vld.sshfl [vmem:[#allocation1 + $0x10] sm:$0xff pattern:$0x75316420]
    %v68 = vld.sshfl [vmem:[#allocation1 + $0x18] sm:$0xff pattern:$0x75316420]
    %vm73 = vcmask 1043456
    %v74 = vsel %vm73, %v63, 0.0
    %v75 = vrot.slane %v74, 4
    %v76 = vadd.f32 %v74, %v75
    %v77 = vrot.slane %v76, 2
    %v78 = vadd.f32 %v76, %v77
    %v79 = vrot.slane %v78, 1
    %v80 = vadd.f32 %v78, %v79
    %v81 = vsel %vm73, %v64, 0.0
    %v82 = vrot.slane %v81, 4
    %v83 = vadd.f32 %v81, %v82
    %v84 = vrot.slane %v83, 2
    %v85 = vadd.f32 %v83, %v84
    %v86 = vrot.slane %v85, 1
    %v87 = vadd.f32 %v85, %v86
    %v88 = vsel %vm73, %v67, 0.0
    %v89 = vrot.slane %v88, 4
    %v90 = vadd.f32 %v88, %v89
    %v91 = vrot.slane %v90, 2
    %v92 = vadd.f32 %v90, %v91
    %v93 = vrot.slane %v92, 1
    %v94 = vadd.f32 %v92, %v93
    %v95 = vsel %vm73, %v68, 0.0
    %v96 = vrot.slane %v95, 4
    %v97 = vadd.f32 %v95, %v96
    %v98 = vrot.slane %v97, 2
    %v99 = vadd.f32 %v97, %v98
    %v100 = vrot.slane %v99, 1
    %v101 = vadd.f32 %v99, %v100
    %v102 = vadd.f32 %v80, 0.0
    %v103 = vadd.f32 %v87, 0.0
    %v104 = vadd.f32 %v94, 0.0
    %v105 = vadd.f32 %v101, 0.0
    %106 = vst [vmem:[#allocation1] ss:$2 sm:$0xff] %v58
    %v107 = vld.sshfl [vmem:[#allocation1] sm:$0xff pattern:$0x75316420]
    %v108 = vld.sshfl [vmem:[#allocation1 + $0x8] sm:$0xff pattern:$0x75316420]
    %s109 = scalar_lea.vmem [#allocation1], 16
    %110 = vst [vmem:[%s109] ss:$2 sm:$0xff] %v59
    %v111 = vld.sshfl [vmem:[#allocation1 + $0x10] sm:$0xff pattern:$0x75316420]
    %v112 = vld.sshfl [vmem:[#allocation1 + $0x18] sm:$0xff pattern:$0x75316420]
    %v117 = vsel %vm73, %v107, -inf
    %v118 = vrot.slane %v117, 4
    %v119 = vmax.f32 %v117, %v118
    %v120 = vrot.slane %v119, 2
    %v121 = vmax.f32 %v119, %v120
    %v122 = vrot.slane %v121, 1
    %v123 = vmax.f32 %v121, %v122
    %v124 = vsel %vm73, %v108, -inf
    %v125 = vrot.slane %v124, 4
    %v126 = vmax.f32 %v124, %v125
    %v127 = vrot.slane %v126, 2
    %v128 = vmax.f32 %v126, %v127
    %v129 = vrot.slane %v128, 1
    %v130 = vmax.f32 %v128, %v129
    %v131 = vsel %vm73, %v111, -inf
    %v132 = vrot.slane %v131, 4
    %v133 = vmax.f32 %v131, %v132
    %v134 = vrot.slane %v133, 2
    %v135 = vmax.f32 %v133, %v134
    %v136 = vrot.slane %v135, 1
    %v137 = vmax.f32 %v135, %v136
    %v138 = vsel %vm73, %v112, -inf
    %v139 = vrot.slane %v138, 4
    %v140 = vmax.f32 %v138, %v139
    %v141 = vrot.slane %v140, 2
    %v142 = vmax.f32 %v140, %v141
    %v143 = vrot.slane %v142, 1
    %v144 = vmax.f32 %v142, %v143
    %v145 = vmul.f32 %v102, 0.25
    %v146 = vmul.f32 %v103, 0.25
    %v147 = vmul.f32 %v104, 0.25
    %v148 = vmul.f32 %v105, 0.25
    %vm153 = vcmask 1041409
    %v154 = vsel %vm153, %v147, %v145
    %v155 = vsel %vm153, %v148, %v146
    %156 = vrot.lane.b32.xlu0 %v154, 3
    %v157 = vpop.permute.xlu0 %156
    %158 = vrot.lane.b32.xlu0 %v155, 3
    %v159 = vpop.permute.xlu0 %158
    %vm160 = vcmask 23552
    %v161 = vsel %vm160, %v157, %v159
    %v165 = vsel %vm160, 0.0, %v157
    %v166 = vsel %vm160, %v159, 0.0
    %v171 = vsel %vm153, %v137, %v123
    %v172 = vsel %vm153, %v144, %v130
    %173 = vrot.lane.b32.xlu0 %v171, 3
    %v174 = vpop.permute.xlu0 %173
    %175 = vrot.lane.b32.xlu0 %v172, 3
    %v176 = vpop.permute.xlu0 %175
    %v177 = vsel %vm160, %v174, %v176
    %v181 = vsel %vm160, 0.0, %v174
    %v182 = vsel %vm160, %v176, 0.0
    %v183 = vld [vmem:[#allocation7] ss:$8 sm:$0x3]
    %v185 = vperm.slane %v183, 0
    %v186 = vperm.slane %v183, 1
    %v189 = vmul.f32 %v165, %v185
    %v190 = vmul.f32 %v161, %v186
    %v191 = vmul.f32 %v181, %v185
    %v192 = vmul.f32 %v177, %v186
    %s193 = scalar_lea.vmem [#allocation7], 1
    %v194 = vld [vmem:[%s193] ss:$8 sm:$0x3]
    %v196 = vperm.slane %v194, 0
    %v197 = vperm.slane %v194, 1
    %198 = vrot.lane.b32.xlu0 %v196, 1
    %v199 = vpop.permute.xlu0 %198
    %200 = vrot.lane.b32.xlu0 %v197, 1
    %v201 = vpop.permute.xlu0 %200
    %vm202 = vcmask 7168
    %v203 = vsel %vm202, %v199, %v201
    %v207 = vmul.f32 %v165, %v199
    %v208 = vmul.f32 %v161, %v203
    %v209 = vmul.f32 %v166, %v201
    %v210 = vmul.f32 %v181, %v199
    %v211 = vmul.f32 %v177, %v203
    %v212 = vmul.f32 %v182, %v201
    %s213 = scalar_lea.vmem [#allocation7], 2
    %v214 = vld [vmem:[%s213] ss:$8 sm:$0x3]
    %v216 = vperm.slane %v214, 0
    %v217 = vperm.slane %v214, 1
    %218 = vrot.lane.b32.xlu0 %v216, 2
    %v219 = vpop.permute.xlu0 %218
    %220 = vrot.lane.b32.xlu0 %v217, 2
    %v221 = vpop.permute.xlu0 %220
    %vm222 = vcmask 15360
    %v223 = vsel %vm222, %v219, %v221
    %v227 = vmul.f32 %v165, %v219
    %v228 = vmul.f32 %v161, %v223
    %v229 = vmul.f32 %v166, %v221
    %v230 = vmul.f32 %v181, %v219
    %v231 = vmul.f32 %v177, %v223
    %v232 = vmul.f32 %v182, %v221
    %s233 = scalar_lea.vmem [#allocation7], 4
    %v234 = vld [vmem:[%s233] ss:$8 sm:$0x3]
    %v236 = vperm.slane %v234, 0
    %v237 = vperm.slane %v234, 1
    %238 = vrot.lane.b32.xlu0 %v236, 4
    %v239 = vpop.permute.xlu0 %238
    %240 = vrot.lane.b32.xlu0 %v237, 4
    %v241 = vpop.permute.xlu0 %240
    %vm242 = vcmask 31744
    %v243 = vsel %vm242, %v239, %v241
    %v247 = vmul.f32 %v165, %v239
    %v248 = vmul.f32 %v161, %v243
    %v249 = vmul.f32 %v166, %v241
    %v250 = vmul.f32 %v181, %v239
    %v251 = vmul.f32 %v177, %v243
    %v252 = vmul.f32 %v182, %v241
    %s253 = scalar_lea.vmem [#allocation7], 5
    %v254 = vld [vmem:[%s253] ss:$8 sm:$0x3]
    %v256 = vperm.slane %v254, 0
    %v257 = vperm.slane %v254, 1
    %258 = vrot.lane.b32.xlu0 %v256, 5
    %v259 = vpop.permute.xlu0 %258
    %260 = vrot.lane.b32.xlu0 %v257, 5
    %v261 = vpop.permute.xlu0 %260
    %vm262 = vcmask 39936
    %v263 = vsel %vm262, %v259, %v261
    %v267 = vmul.f32 %v165, %v259
    %v268 = vmul.f32 %v161, %v263
    %v269 = vmul.f32 %v166, %v261
    %v270 = vmul.f32 %v181, %v259
    %v271 = vmul.f32 %v177, %v263
    %v272 = vmul.f32 %v182, %v261
    %s273 = scalar_lea.vmem [#allocation7], 6
    %v274 = vld [vmem:[%s273] ss:$8 sm:$0x3]
    %v276 = vperm.slane %v274, 0
    %v277 = vperm.slane %v274, 1
    %278 = vrot.lane.b32.xlu0 %v276, 6
    %v279 = vpop.permute.xlu0 %278
    %280 = vrot.lane.b32.xlu0 %v277, 6
    %v281 = vpop.permute.xlu0 %280
    %vm282 = vcmask 48128
    %v283 = vsel %vm282, %v279, %v281
    %v287 = vmul.f32 %v165, %v279
    %v288 = vmul.f32 %v161, %v283
    %v289 = vmul.f32 %v166, %v281
    %v290 = vmul.f32 %v181, %v279
    %v291 = vmul.f32 %v177, %v283
    %v292 = vmul.f32 %v182, %v281
    %s293 = sld [smem:[#allocation6]]
    %s294 = sld [smem:[#allocation6 + $0x31]]
    %v295 = vstv %s293
    %v296 = vmul.f32 %v295, %v189
    %v297 = vmul.f32 %v295, %v190
    %v298 = vadd.f32 %v296, 0.0
    %v299 = vadd.f32 %v297, 0.0
    %v300 = vstv %s294
    %v301 = vmul.f32 %v300, %v191
    %v302 = vmul.f32 %v300, %v192
    %v303 = vadd.f32 %v298, %v301
    %v304 = vadd.f32 %v299, %v302
    %s305 = sld [smem:[#allocation6 + $0x1]]
    %s306 = sld [smem:[#allocation6 + $0x32]]
    %v307 = vstv %s305
    %v308 = vmul.f32 %v307, %v207
    %v309 = vmul.f32 %v307, %v208
    %v310 = vmul.f32 %v307, %v209
    %314 = vrot.lane.b32.xlu0 %v308, 127
    %v315 = vpop.permute.xlu0 %314
    %316 = vrot.lane.b32.xlu0 %v309, 127
    %v317 = vpop.permute.xlu0 %316
    %318 = vrot.lane.b32.xlu0 %v310, 127
    %v319 = vpop.permute.xlu0 %318
    %vm320 = vcmask 1039360
    %v321 = vsel %vm320, %v315, %v317
    %v322 = vsel %vm320, %v317, %v319
    %v325 = vadd.f32 %v303, %v321
    %v326 = vadd.f32 %v304, %v322
    %v327 = vstv %s306
    %v328 = vmul.f32 %v327, %v210
    %v329 = vmul.f32 %v327, %v211
    %v330 = vmul.f32 %v327, %v212
    %334 = vrot.lane.b32.xlu0 %v328, 127
    %v335 = vpop.permute.xlu0 %334
    %336 = vrot.lane.b32.xlu0 %v329, 127
    %v337 = vpop.permute.xlu0 %336
    %338 = vrot.lane.b32.xlu0 %v330, 127
    %v339 = vpop.permute.xlu0 %338
    %v340 = vsel %vm320, %v335, %v337
    %v341 = vsel %vm320, %v337, %v339
    %v344 = vadd.f32 %v325, %v340
    %v345 = vadd.f32 %v326, %v341
    %s346 = sld [smem:[#allocation6 + $0x2]]
    %s347 = sld [smem:[#allocation6 + $0x33]]
    %v348 = vstv %s346
    %v349 = vmul.f32 %v348, %v227
    %v350 = vmul.f32 %v348, %v228
    %v351 = vmul.f32 %v348, %v229
    %355 = vrot.lane.b32.xlu0 %v349, 126
    %v356 = vpop.permute.xlu0 %355
    %357 = vrot.lane.b32.xlu0 %v350, 126
    %v358 = vpop.permute.xlu0 %357
    %359 = vrot.lane.b32.xlu0 %v351, 126
    %v360 = vpop.permute.xlu0 %359
    %vm361 = vcmask 1031168
    %v362 = vsel %vm361, %v356, %v358
    %v363 = vsel %vm361, %v358, %v360
    %v366 = vadd.f32 %v344, %v362
    %v367 = vadd.f32 %v345, %v363
    %v368 = vstv %s347
    %v369 = vmul.f32 %v368, %v230
    %v370 = vmul.f32 %v368, %v231
    %v371 = vmul.f32 %v368, %v232
    %375 = vrot.lane.b32.xlu0 %v369, 126
    %v376 = vpop.permute.xlu0 %375
    %377 = vrot.lane.b32.xlu0 %v370, 126
    %v378 = vpop.permute.xlu0 %377
    %379 = vrot.lane.b32.xlu0 %v371, 126
    %v380 = vpop.permute.xlu0 %379
    %v381 = vsel %vm361, %v376, %v378
    %v382 = vsel %vm361, %v378, %v380
    %v385 = vadd.f32 %v366, %v381
    %v386 = vadd.f32 %v367, %v382
    %s387 = sld [smem:[#allocation6 + $0x3]]
    %s388 = sld [smem:[#allocation6 + $0x34]]
    %v389 = vstv %s387
    %v390 = vmul.f32 %v389, %v165
    %v391 = vmul.f32 %v389, %v161
    %v392 = vmul.f32 %v389, %v166
    %396 = vrot.lane.b32.xlu0 %v390, 125
    %v397 = vpop.permute.xlu0 %396
    %398 = vrot.lane.b32.xlu0 %v391, 125
    %v399 = vpop.permute.xlu0 %398
    %400 = vrot.lane.b32.xlu0 %v392, 125
    %v401 = vpop.permute.xlu0 %400
    %vm402 = vcmask 1022976
    %v403 = vsel %vm402, %v397, %v399
    %v404 = vsel %vm402, %v399, %v401
    %v407 = vadd.f32 %v385, %v403
    %v408 = vadd.f32 %v386, %v404
    %v409 = vstv %s388
    %v410 = vmul.f32 %v409, %v181
    %v411 = vmul.f32 %v409, %v177
    %v412 = vmul.f32 %v409, %v182
    %416 = vrot.lane.b32.xlu0 %v410, 125
    %v417 = vpop.permute.xlu0 %416
    %418 = vrot.lane.b32.xlu0 %v411, 125
    %v419 = vpop.permute.xlu0 %418
    %420 = vrot.lane.b32.xlu0 %v412, 125
    %v421 = vpop.permute.xlu0 %420
    %v422 = vsel %vm402, %v417, %v419
    %v423 = vsel %vm402, %v419, %v421
    %v426 = vadd.f32 %v407, %v422
    %v427 = vadd.f32 %v408, %v423
    %s428 = sld [smem:[#allocation6 + $0x4]]
    %s429 = sld [smem:[#allocation6 + $0x35]]
    %v430 = vstv %s428
    %v431 = vmul.f32 %v430, %v247
    %v432 = vmul.f32 %v430, %v248
    %v433 = vmul.f32 %v430, %v249
    %437 = vrot.lane.b32.xlu0 %v431, 124
    %v438 = vpop.permute.xlu0 %437
    %439 = vrot.lane.b32.xlu0 %v432, 124
    %v440 = vpop.permute.xlu0 %439
    %441 = vrot.lane.b32.xlu0 %v433, 124
    %v442 = vpop.permute.xlu0 %441
    %vm443 = vcmask 1014784
    %v444 = vsel %vm443, %v438, %v440
    %v445 = vsel %vm443, %v440, %v442
    %v448 = vadd.f32 %v426, %v444
    %v449 = vadd.f32 %v427, %v445
    %v450 = vstv %s429
    %v451 = vmul.f32 %v450, %v250
    %v452 = vmul.f32 %v450, %v251
    %v453 = vmul.f32 %v450, %v252
    %457 = vrot.lane.b32.xlu0 %v451, 124
    %v458 = vpop.permute.xlu0 %457
    %459 = vrot.lane.b32.xlu0 %v452, 124
    %v460 = vpop.permute.xlu0 %459
    %461 = vrot.lane.b32.xlu0 %v453, 124
    %v462 = vpop.permute.xlu0 %461
    %v463 = vsel %vm443, %v458, %v460
    %v464 = vsel %vm443, %v460, %v462
    %v467 = vadd.f32 %v448, %v463
    %v468 = vadd.f32 %v449, %v464
    %s469 = sld [smem:[#allocation6 + $0x5]]
    %s470 = sld [smem:[#allocation6 + $0x36]]
    %v471 = vstv %s469
    %v472 = vmul.f32 %v471, %v267
    %v473 = vmul.f32 %v471, %v268
    %v474 = vmul.f32 %v471, %v269
    %478 = vrot.lane.b32.xlu0 %v472, 123
    %v479 = vpop.permute.xlu0 %478
    %480 = vrot.lane.b32.xlu0 %v473, 123
    %v481 = vpop.permute.xlu0 %480
    %482 = vrot.lane.b32.xlu0 %v474, 123
    %v483 = vpop.permute.xlu0 %482
    %vm484 = vcmask 1006592
    %v485 = vsel %vm484, %v479, %v481
    %v486 = vsel %vm484, %v481, %v483
    %v489 = vadd.f32 %v467, %v485
    %v490 = vadd.f32 %v468, %v486
    %v491 = vstv %s470
    %v492 = vmul.f32 %v491, %v270
    %v493 = vmul.f32 %v491, %v271
    %v494 = vmul.f32 %v491, %v272
    %498 = vrot.lane.b32.xlu0 %v492, 123
    %v499 = vpop.permute.xlu0 %498
    %500 = vrot.lane.b32.xlu0 %v493, 123
    %v501 = vpop.permute.xlu0 %500
    %502 = vrot.lane.b32.xlu0 %v494, 123
    %v503 = vpop.permute.xlu0 %502
    %v504 = vsel %vm484, %v499, %v501
    %v505 = vsel %vm484, %v501, %v503
    %v508 = vadd.f32 %v489, %v504
    %v509 = vadd.f32 %v490, %v505
    %s510 = sld [smem:[#allocation6 + $0x6]]
    %s511 = sld [smem:[#allocation6 + $0x37]]
    %v512 = vstv %s510
    %v513 = vmul.f32 %v512, %v287
    %v514 = vmul.f32 %v512, %v288
    %v515 = vmul.f32 %v512, %v289
    %519 = vrot.lane.b32.xlu0 %v513, 122
    %v520 = vpop.permute.xlu0 %519
    %521 = vrot.lane.b32.xlu0 %v514, 122
    %v522 = vpop.permute.xlu0 %521
    %523 = vrot.lane.b32.xlu0 %v515, 122
    %v524 = vpop.permute.xlu0 %523
    %vm525 = vcmask 998400
    %v526 = vsel %vm525, %v520, %v522
    %v527 = vsel %vm525, %v522, %v524
    %v530 = vadd.f32 %v508, %v526
    %v531 = vadd.f32 %v509, %v527
    %v532 = vstv %s511
    %v533 = vmul.f32 %v532, %v290
    %v534 = vmul.f32 %v532, %v291
    %v535 = vmul.f32 %v532, %v292
    %539 = vrot.lane.b32.xlu0 %v533, 122
    %v540 = vpop.permute.xlu0 %539
    %541 = vrot.lane.b32.xlu0 %v534, 122
    %v542 = vpop.permute.xlu0 %541
    %543 = vrot.lane.b32.xlu0 %v535, 122
    %v544 = vpop.permute.xlu0 %543
    %v545 = vsel %vm525, %v540, %v542
    %v546 = vsel %vm525, %v542, %v544
    %v549 = vadd.f32 %v530, %v545
    %v550 = vadd.f32 %v531, %v546
    %553 = vrot.lane.b32.xlu0 %v549, 48
    %v554 = vpop.permute.xlu0 %553
    %555 = vrot.lane.b32.xlu0 %v550, 48
    %v556 = vpop.permute.xlu0 %555
    %vm557 = vcmask 392192
    %v558 = vsel %vm557, %v554, %v556
    %v561 = vsel %vm557, 0.0, %v554
    %v562 = vadd.f32 %v561, 0.0
    %v563 = vadd.f32 %v558, 0.0
    %s564 = sld [smem:[#allocation6 + $0x7]]
    %s565 = sld [smem:[#allocation6 + $0x38]]
    %v566 = vstv %s564
    %v567 = vmul.f32 %v566, %v189
    %v568 = vmul.f32 %v566, %v190
    %v569 = vadd.f32 %v567, 0.0
    %v570 = vadd.f32 %v568, 0.0
    %v571 = vstv %s565
    %v572 = vmul.f32 %v571, %v191
    %v573 = vmul.f32 %v571, %v192
    %v574 = vadd.f32 %v569, %v572
    %v575 = vadd.f32 %v570, %v573
    %s576 = sld [smem:[#allocation6 + $0x8]]
    %s577 = sld [smem:[#allocation6 + $0x39]]
    %v578 = vstv %s576
    %v579 = vmul.f32 %v578, %v207
    %v580 = vmul.f32 %v578, %v208
    %v581 = vmul.f32 %v578, %v209
    %585 = vrot.lane.b32.xlu0 %v579, 127
    %v586 = vpop.permute.xlu0 %585
    %587 = vrot.lane.b32.xlu0 %v580, 127
    %v588 = vpop.permute.xlu0 %587
    %589 = vrot.lane.b32.xlu0 %v581, 127
    %v590 = vpop.permute.xlu0 %589
    %v591 = vsel %vm320, %v586, %v588
    %v592 = vsel %vm320, %v588, %v590
    %v595 = vadd.f32 %v574, %v591
    %v596 = vadd.f32 %v575, %v592
    %v597 = vstv %s577
    %v598 = vmul.f32 %v597, %v210
    %v599 = vmul.f32 %v597, %v211
    %v600 = vmul.f32 %v597, %v212
    %604 = vrot.lane.b32.xlu0 %v598, 127
    %v605 = vpop.permute.xlu0 %604
    %606 = vrot.lane.b32.xlu0 %v599, 127
    %v607 = vpop.permute.xlu0 %606
    %608 = vrot.lane.b32.xlu0 %v600, 127
    %v609 = vpop.permute.xlu0 %608
    %v610 = vsel %vm320, %v605, %v607
    %v611 = vsel %vm320, %v607, %v609
    %v614 = vadd.f32 %v595, %v610
    %v615 = vadd.f32 %v596, %v611
    %s616 = sld [smem:[#allocation6 + $0x9]]
    %s617 = sld [smem:[#allocation6 + $0x3a]]
    %v618 = vstv %s616
    %v619 = vmul.f32 %v618, %v227
    %v620 = vmul.f32 %v618, %v228
    %v621 = vmul.f32 %v618, %v229
    %625 = vrot.lane.b32.xlu0 %v619, 126
    %v626 = vpop.permute.xlu0 %625
    %627 = vrot.lane.b32.xlu0 %v620, 126
    %v628 = vpop.permute.xlu0 %627
    %629 = vrot.lane.b32.xlu0 %v621, 126
    %v630 = vpop.permute.xlu0 %629
    %v631 = vsel %vm361, %v626, %v628
    %v632 = vsel %vm361, %v628, %v630
    %v635 = vadd.f32 %v614, %v631
    %v636 = vadd.f32 %v615, %v632
    %v637 = vstv %s617
    %v638 = vmul.f32 %v637, %v230
    %v639 = vmul.f32 %v637, %v231
    %v640 = vmul.f32 %v637, %v232
    %644 = vrot.lane.b32.xlu0 %v638, 126
    %v645 = vpop.permute.xlu0 %644
    %646 = vrot.lane.b32.xlu0 %v639, 126
    %v647 = vpop.permute.xlu0 %646
    %648 = vrot.lane.b32.xlu0 %v640, 126
    %v649 = vpop.permute.xlu0 %648
    %v650 = vsel %vm361, %v645, %v647
    %v651 = vsel %vm361, %v647, %v649
    %v654 = vadd.f32 %v635, %v650
    %v655 = vadd.f32 %v636, %v651
    %s656 = sld [smem:[#allocation6 + $0xa]]
    %s657 = sld [smem:[#allocation6 + $0x3b]]
    %v658 = vstv %s656
    %v659 = vmul.f32 %v658, %v165
    %v660 = vmul.f32 %v658, %v161
    %v661 = vmul.f32 %v658, %v166
    %665 = vrot.lane.b32.xlu0 %v659, 125
    %v666 = vpop.permute.xlu0 %665
    %667 = vrot.lane.b32.xlu0 %v660, 125
    %v668 = vpop.permute.xlu0 %667
    %669 = vrot.lane.b32.xlu0 %v661, 125
    %v670 = vpop.permute.xlu0 %669
    %v671 = vsel %vm402, %v666, %v668
    %v672 = vsel %vm402, %v668, %v670
    %v675 = vadd.f32 %v654, %v671
    %v676 = vadd.f32 %v655, %v672
    %v677 = vstv %s657
    %v678 = vmul.f32 %v677, %v181
    %v679 = vmul.f32 %v677, %v177
    %v680 = vmul.f32 %v677, %v182
    %684 = vrot.lane.b32.xlu0 %v678, 125
    %v685 = vpop.permute.xlu0 %684
    %686 = vrot.lane.b32.xlu0 %v679, 125
    %v687 = vpop.permute.xlu0 %686
    %688 = vrot.lane.b32.xlu0 %v680, 125
    %v689 = vpop.permute.xlu0 %688
    %v690 = vsel %vm402, %v685, %v687
    %v691 = vsel %vm402, %v687, %v689
    %v694 = vadd.f32 %v675, %v690
    %v695 = vadd.f32 %v676, %v691
    %s696 = sld [smem:[#allocation6 + $0xb]]
    %s697 = sld [smem:[#allocation6 + $0x3c]]
    %v698 = vstv %s696
    %v699 = vmul.f32 %v698, %v247
    %v700 = vmul.f32 %v698, %v248
    %v701 = vmul.f32 %v698, %v249
    %705 = vrot.lane.b32.xlu0 %v699, 124
    %v706 = vpop.permute.xlu0 %705
    %707 = vrot.lane.b32.xlu0 %v700, 124
    %v708 = vpop.permute.xlu0 %707
    %709 = vrot.lane.b32.xlu0 %v701, 124
    %v710 = vpop.permute.xlu0 %709
    %v711 = vsel %vm443, %v706, %v708
    %v712 = vsel %vm443, %v708, %v710
    %v715 = vadd.f32 %v694, %v711
    %v716 = vadd.f32 %v695, %v712
    %v717 = vstv %s697
    %v718 = vmul.f32 %v717, %v250
    %v719 = vmul.f32 %v717, %v251
    %v720 = vmul.f32 %v717, %v252
    %724 = vrot.lane.b32.xlu0 %v718, 124
    %v725 = vpop.permute.xlu0 %724
    %726 = vrot.lane.b32.xlu0 %v719, 124
    %v727 = vpop.permute.xlu0 %726
    %728 = vrot.lane.b32.xlu0 %v720, 124
    %v729 = vpop.permute.xlu0 %728
    %v730 = vsel %vm443, %v725, %v727
    %v731 = vsel %vm443, %v727, %v729
    %v734 = vadd.f32 %v715, %v730
    %v735 = vadd.f32 %v716, %v731
    %s736 = sld [smem:[#allocation6 + $0xc]]
    %s737 = sld [smem:[#allocation6 + $0x3d]]
    %v738 = vstv %s736
    %v739 = vmul.f32 %v738, %v267
    %v740 = vmul.f32 %v738, %v268
    %v741 = vmul.f32 %v738, %v269
    %745 = vrot.lane.b32.xlu0 %v739, 123
    %v746 = vpop.permute.xlu0 %745
    %747 = vrot.lane.b32.xlu0 %v740, 123
    %v748 = vpop.permute.xlu0 %747
    %749 = vrot.lane.b32.xlu0 %v741, 123
    %v750 = vpop.permute.xlu0 %749
    %v751 = vsel %vm484, %v746, %v748
    %v752 = vsel %vm484, %v748, %v750
    %v755 = vadd.f32 %v734, %v751
    %v756 = vadd.f32 %v735, %v752
    %v757 = vstv %s737
    %v758 = vmul.f32 %v757, %v270
    %v759 = vmul.f32 %v757, %v271
    %v760 = vmul.f32 %v757, %v272
    %764 = vrot.lane.b32.xlu0 %v758, 123
    %v765 = vpop.permute.xlu0 %764
    %766 = vrot.lane.b32.xlu0 %v759, 123
    %v767 = vpop.permute.xlu0 %766
    %768 = vrot.lane.b32.xlu0 %v760, 123
    %v769 = vpop.permute.xlu0 %768
    %v770 = vsel %vm484, %v765, %v767
    %v771 = vsel %vm484, %v767, %v769
    %v774 = vadd.f32 %v755, %v770
    %v775 = vadd.f32 %v756, %v771
    %s776 = sld [smem:[#allocation6 + $0xd]]
    %s777 = sld [smem:[#allocation6 + $0x3e]]
    %v778 = vstv %s776
    %v779 = vmul.f32 %v778, %v287
    %v780 = vmul.f32 %v778, %v288
    %v781 = vmul.f32 %v778, %v289
    %785 = vrot.lane.b32.xlu0 %v779, 122
    %v786 = vpop.permute.xlu0 %785
    %787 = vrot.lane.b32.xlu0 %v780, 122
    %v788 = vpop.permute.xlu0 %787
    %789 = vrot.lane.b32.xlu0 %v781, 122
    %v790 = vpop.permute.xlu0 %789
    %v791 = vsel %vm525, %v786, %v788
    %v792 = vsel %vm525, %v788, %v790
    %v795 = vadd.f32 %v774, %v791
    %v796 = vadd.f32 %v775, %v792
    %v797 = vstv %s777
    %v798 = vmul.f32 %v797, %v290
    %v799 = vmul.f32 %v797, %v291
    %v800 = vmul.f32 %v797, %v292
    %804 = vrot.lane.b32.xlu0 %v798, 122
    %v805 = vpop.permute.xlu0 %804
    %806 = vrot.lane.b32.xlu0 %v799, 122
    %v807 = vpop.permute.xlu0 %806
    %808 = vrot.lane.b32.xlu0 %v800, 122
    %v809 = vpop.permute.xlu0 %808
    %v810 = vsel %vm525, %v805, %v807
    %v811 = vsel %vm525, %v807, %v809
    %v814 = vadd.f32 %v795, %v810
    %v815 = vadd.f32 %v796, %v811
    %818 = vrot.lane.b32.xlu0 %v814, 48
    %v819 = vpop.permute.xlu0 %818
    %820 = vrot.lane.b32.xlu0 %v815, 48
    %v821 = vpop.permute.xlu0 %820
    %v822 = vsel %vm557, %v819, %v821
    %v825 = vsel %vm557, 0.0, %v819
    %v826 = vsel %vm557, %v821, 0.0
    %829 = vrot.lane.b32.xlu0 %v825, 112
    %v830 = vpop.permute.xlu0 %829
    %831 = vrot.lane.b32.xlu0 %v822, 112
    %v832 = vpop.permute.xlu0 %831
    %833 = vrot.lane.b32.xlu0 %v826, 112
    %v834 = vpop.permute.xlu0 %833
    %vm835 = vcmask 916480
    %v836 = vsel %vm835, %v830, %v832
    %v837 = vsel %vm835, %v832, %v834
    %v840 = vadd.f32 %v562, %v836
    %v841 = vadd.f32 %v563, %v837
    %s842 = sld [smem:[#allocation6 + $0xe]]
    %s843 = sld [smem:[#allocation6 + $0x3f]]
    %v844 = vstv %s842
    %v845 = vmul.f32 %v844, %v189
    %v846 = vmul.f32 %v844, %v190
    %v847 = vadd.f32 %v845, 0.0
    %v848 = vadd.f32 %v846, 0.0
    %v849 = vstv %s843
    %v850 = vmul.f32 %v849, %v191
    %v851 = vmul.f32 %v849, %v192
    %v852 = vadd.f32 %v847, %v850
    %v853 = vadd.f32 %v848, %v851
    %s854 = sld [smem:[#allocation6 + $0xf]]
    %s855 = sld [smem:[#allocation6 + $0x40]]
    %v856 = vstv %s854
    %v857 = vmul.f32 %v856, %v207
    %v858 = vmul.f32 %v856, %v208
    %v859 = vmul.f32 %v856, %v209
    %863 = vrot.lane.b32.xlu0 %v857, 127
    %v864 = vpop.permute.xlu0 %863
    %865 = vrot.lane.b32.xlu0 %v858, 127
    %v866 = vpop.permute.xlu0 %865
    %867 = vrot.lane.b32.xlu0 %v859, 127
    %v868 = vpop.permute.xlu0 %867
    %v869 = vsel %vm320, %v864, %v866
    %v870 = vsel %vm320, %v866, %v868
    %v873 = vadd.f32 %v852, %v869
    %v874 = vadd.f32 %v853, %v870
    %v875 = vstv %s855
    %v876 = vmul.f32 %v875, %v210
    %v877 = vmul.f32 %v875, %v211
    %v878 = vmul.f32 %v875, %v212
    %882 = vrot.lane.b32.xlu0 %v876, 127
    %v883 = vpop.permute.xlu0 %882
    %884 = vrot.lane.b32.xlu0 %v877, 127
    %v885 = vpop.permute.xlu0 %884
    %886 = vrot.lane.b32.xlu0 %v878, 127
    %v887 = vpop.permute.xlu0 %886
    %v888 = vsel %vm320, %v883, %v885
    %v889 = vsel %vm320, %v885, %v887
    %v892 = vadd.f32 %v873, %v888
    %v893 = vadd.f32 %v874, %v889
    %s894 = sld [smem:[#allocation6 + $0x10]]
    %s895 = sld [smem:[#allocation6 + $0x41]]
    %v896 = vstv %s894
    %v897 = vmul.f32 %v896, %v227
    %v898 = vmul.f32 %v896, %v228
    %v899 = vmul.f32 %v896, %v229
    %903 = vrot.lane.b32.xlu0 %v897, 126
    %v904 = vpop.permute.xlu0 %903
    %905 = vrot.lane.b32.xlu0 %v898, 126
    %v906 = vpop.permute.xlu0 %905
    %907 = vrot.lane.b32.xlu0 %v899, 126
    %v908 = vpop.permute.xlu0 %907
    %v909 = vsel %vm361, %v904, %v906
    %v910 = vsel %vm361, %v906, %v908
    %v913 = vadd.f32 %v892, %v909
    %v914 = vadd.f32 %v893, %v910
    %v915 = vstv %s895
    %v916 = vmul.f32 %v915, %v230
    %v917 = vmul.f32 %v915, %v231
    %v918 = vmul.f32 %v915, %v232
    %922 = vrot.lane.b32.xlu0 %v916, 126
    %v923 = vpop.permute.xlu0 %922
    %924 = vrot.lane.b32.xlu0 %v917, 126
    %v925 = vpop.permute.xlu0 %924
    %926 = vrot.lane.b32.xlu0 %v918, 126
    %v927 = vpop.permute.xlu0 %926
    %v928 = vsel %vm361, %v923, %v925
    %v929 = vsel %vm361, %v925, %v927
    %v932 = vadd.f32 %v913, %v928
    %v933 = vadd.f32 %v914, %v929
    %s934 = sld [smem:[#allocation6 + $0x11]]
    %s935 = sld [smem:[#allocation6 + $0x42]]
    %v936 = vstv %s934
    %v937 = vmul.f32 %v936, %v165
    %v938 = vmul.f32 %v936, %v161
    %v939 = vmul.f32 %v936, %v166
    %943 = vrot.lane.b32.xlu0 %v937, 125
    %v944 = vpop.permute.xlu0 %943
    %945 = vrot.lane.b32.xlu0 %v938, 125
    %v946 = vpop.permute.xlu0 %945
    %947 = vrot.lane.b32.xlu0 %v939, 125
    %v948 = vpop.permute.xlu0 %947
    %v949 = vsel %vm402, %v944, %v946
    %v950 = vsel %vm402, %v946, %v948
    %v953 = vadd.f32 %v932, %v949
    %v954 = vadd.f32 %v933, %v950
    %v955 = vstv %s935
    %v956 = vmul.f32 %v955, %v181
    %v957 = vmul.f32 %v955, %v177
    %v958 = vmul.f32 %v955, %v182
    %962 = vrot.lane.b32.xlu0 %v956, 125
    %v963 = vpop.permute.xlu0 %962
    %964 = vrot.lane.b32.xlu0 %v957, 125
    %v965 = vpop.permute.xlu0 %964
    %966 = vrot.lane.b32.xlu0 %v958, 125
    %v967 = vpop.permute.xlu0 %966
    %v968 = vsel %vm402, %v963, %v965
    %v969 = vsel %vm402, %v965, %v967
    %v972 = vadd.f32 %v953, %v968
    %v973 = vadd.f32 %v954, %v969
    %s974 = sld [smem:[#allocation6 + $0x12]]
    %s975 = sld [smem:[#allocation6 + $0x43]]
    %v976 = vstv %s974
    %v977 = vmul.f32 %v976, %v247
    %v978 = vmul.f32 %v976, %v248
    %v979 = vmul.f32 %v976, %v249
    %983 = vrot.lane.b32.xlu0 %v977, 124
    %v984 = vpop.permute.xlu0 %983
    %985 = vrot.lane.b32.xlu0 %v978, 124
    %v986 = vpop.permute.xlu0 %985
    %987 = vrot.lane.b32.xlu0 %v979, 124
    %v988 = vpop.permute.xlu0 %987
    %v989 = vsel %vm443, %v984, %v986
    %v990 = vsel %vm443, %v986, %v988
    %v993 = vadd.f32 %v972, %v989
    %v994 = vadd.f32 %v973, %v990
    %v995 = vstv %s975
    %v996 = vmul.f32 %v995, %v250
    %v997 = vmul.f32 %v995, %v251
    %v998 = vmul.f32 %v995, %v252
    %1002 = vrot.lane.b32.xlu0 %v996, 124
    %v1003 = vpop.permute.xlu0 %1002
    %1004 = vrot.lane.b32.xlu0 %v997, 124
    %v1005 = vpop.permute.xlu0 %1004
    %1006 = vrot.lane.b32.xlu0 %v998, 124
    %v1007 = vpop.permute.xlu0 %1006
    %v1008 = vsel %vm443, %v1003, %v1005
    %v1009 = vsel %vm443, %v1005, %v1007
    %v1012 = vadd.f32 %v993, %v1008
    %v1013 = vadd.f32 %v994, %v1009
    %s1014 = sld [smem:[#allocation6 + $0x13]]
    %s1015 = sld [smem:[#allocation6 + $0x44]]
    %v1016 = vstv %s1014
    %v1017 = vmul.f32 %v1016, %v267
    %v1018 = vmul.f32 %v1016, %v268
    %v1019 = vmul.f32 %v1016, %v269
    %1023 = vrot.lane.b32.xlu0 %v1017, 123
    %v1024 = vpop.permute.xlu0 %1023
    %1025 = vrot.lane.b32.xlu0 %v1018, 123
    %v1026 = vpop.permute.xlu0 %1025
    %1027 = vrot.lane.b32.xlu0 %v1019, 123
    %v1028 = vpop.permute.xlu0 %1027
    %v1029 = vsel %vm484, %v1024, %v1026
    %v1030 = vsel %vm484, %v1026, %v1028
    %v1033 = vadd.f32 %v1012, %v1029
    %v1034 = vadd.f32 %v1013, %v1030
    %v1035 = vstv %s1015
    %v1036 = vmul.f32 %v1035, %v270
    %v1037 = vmul.f32 %v1035, %v271
    %v1038 = vmul.f32 %v1035, %v272
    %1042 = vrot.lane.b32.xlu0 %v1036, 123
    %v1043 = vpop.permute.xlu0 %1042
    %1044 = vrot.lane.b32.xlu0 %v1037, 123
    %v1045 = vpop.permute.xlu0 %1044
    %1046 = vrot.lane.b32.xlu0 %v1038, 123
    %v1047 = vpop.permute.xlu0 %1046
    %v1048 = vsel %vm484, %v1043, %v1045
    %v1049 = vsel %vm484, %v1045, %v1047
    %v1052 = vadd.f32 %v1033, %v1048
    %v1053 = vadd.f32 %v1034, %v1049
    %s1054 = sld [smem:[#allocation6 + $0x14]]
    %s1055 = sld [smem:[#allocation6 + $0x45]]
    %v1056 = vstv %s1054
    %v1057 = vmul.f32 %v1056, %v287
    %v1058 = vmul.f32 %v1056, %v288
    %v1059 = vmul.f32 %v1056, %v289
    %1063 = vrot.lane.b32.xlu0 %v1057, 122
    %v1064 = vpop.permute.xlu0 %1063
    %1065 = vrot.lane.b32.xlu0 %v1058, 122
    %v1066 = vpop.permute.xlu0 %1065
    %1067 = vrot.lane.b32.xlu0 %v1059, 122
    %v1068 = vpop.permute.xlu0 %1067
    %v1069 = vsel %vm525, %v1064, %v1066
    %v1070 = vsel %vm525, %v1066, %v1068
    %v1073 = vadd.f32 %v1052, %v1069
    %v1074 = vadd.f32 %v1053, %v1070
    %v1075 = vstv %s1055
    %v1076 = vmul.f32 %v1075, %v290
    %v1077 = vmul.f32 %v1075, %v291
    %v1078 = vmul.f32 %v1075, %v292
    %1082 = vrot.lane.b32.xlu0 %v1076, 122
    %v1083 = vpop.permute.xlu0 %1082
    %1084 = vrot.lane.b32.xlu0 %v1077, 122
    %v1085 = vpop.permute.xlu0 %1084
    %1086 = vrot.lane.b32.xlu0 %v1078, 122
    %v1087 = vpop.permute.xlu0 %1086
    %v1088 = vsel %vm525, %v1083, %v1085
    %v1089 = vsel %vm525, %v1085, %v1087
    %v1092 = vadd.f32 %v1073, %v1088
    %v1093 = vadd.f32 %v1074, %v1089
    %1096 = vrot.lane.b32.xlu0 %v1092, 48
    %v1097 = vpop.permute.xlu0 %1096
    %1098 = vrot.lane.b32.xlu0 %v1093, 48
    %v1099 = vpop.permute.xlu0 %1098
    %v1100 = vsel %vm557, %v1097, %v1099
    %v1103 = vsel %vm557, 0.0, %v1097
    %v1104 = vsel %vm557, %v1099, 0.0
    %1107 = vrot.lane.b32.xlu0 %v1103, 96
    %v1108 = vpop.permute.xlu0 %1107
    %1109 = vrot.lane.b32.xlu0 %v1100, 96
    %v1110 = vpop.permute.xlu0 %1109
    %1111 = vrot.lane.b32.xlu0 %v1104, 96
    %v1112 = vpop.permute.xlu0 %1111
    %vm1113 = vcmask 785408
    %v1114 = vsel %vm1113, %v1108, %v1110
    %v1115 = vsel %vm1113, %v1110, %v1112
    %v1118 = vadd.f32 %v840, %v1114
    %v1119 = vadd.f32 %v841, %v1115
    %s1120 = sld [smem:[#allocation6 + $0x15]]
    %s1121 = sld [smem:[#allocation6 + $0x46]]
    %v1122 = vstv %s1120
    %v1123 = vmul.f32 %v1122, %v189
    %v1124 = vmul.f32 %v1122, %v190
    %v1125 = vadd.f32 %v1123, 0.0
    %v1126 = vadd.f32 %v1124, 0.0
    %v1127 = vstv %s1121
    %v1128 = vmul.f32 %v1127, %v191
    %v1129 = vmul.f32 %v1127, %v192
    %v1130 = vadd.f32 %v1125, %v1128
    %v1131 = vadd.f32 %v1126, %v1129
    %s1132 = sld [smem:[#allocation6 + $0x16]]
    %s1133 = sld [smem:[#allocation6 + $0x47]]
    %v1134 = vstv %s1132
    %v1135 = vmul.f32 %v1134, %v207
    %v1136 = vmul.f32 %v1134, %v208
    %v1137 = vmul.f32 %v1134, %v209
    %1141 = vrot.lane.b32.xlu0 %v1135, 127
    %v1142 = vpop.permute.xlu0 %1141
    %1143 = vrot.lane.b32.xlu0 %v1136, 127
    %v1144 = vpop.permute.xlu0 %1143
    %1145 = vrot.lane.b32.xlu0 %v1137, 127
    %v1146 = vpop.permute.xlu0 %1145
    %v1147 = vsel %vm320, %v1142, %v1144
    %v1148 = vsel %vm320, %v1144, %v1146
    %v1151 = vadd.f32 %v1130, %v1147
    %v1152 = vadd.f32 %v1131, %v1148
    %v1153 = vstv %s1133
    %v1154 = vmul.f32 %v1153, %v210
    %v1155 = vmul.f32 %v1153, %v211
    %v1156 = vmul.f32 %v1153, %v212
    %1160 = vrot.lane.b32.xlu0 %v1154, 127
    %v1161 = vpop.permute.xlu0 %1160
    %1162 = vrot.lane.b32.xlu0 %v1155, 127
    %v1163 = vpop.permute.xlu0 %1162
    %1164 = vrot.lane.b32.xlu0 %v1156, 127
    %v1165 = vpop.permute.xlu0 %1164
    %v1166 = vsel %vm320, %v1161, %v1163
    %v1167 = vsel %vm320, %v1163, %v1165
    %v1170 = vadd.f32 %v1151, %v1166
    %v1171 = vadd.f32 %v1152, %v1167
    %s1172 = sld [smem:[#allocation6 + $0x17]]
    %s1173 = sld [smem:[#allocation6 + $0x48]]
    %v1174 = vstv %s1172
    %v1175 = vmul.f32 %v1174, %v227
    %v1176 = vmul.f32 %v1174, %v228
    %v1177 = vmul.f32 %v1174, %v229
    %1181 = vrot.lane.b32.xlu0 %v1175, 126
    %v1182 = vpop.permute.xlu0 %1181
    %1183 = vrot.lane.b32.xlu0 %v1176, 126
    %v1184 = vpop.permute.xlu0 %1183
    %1185 = vrot.lane.b32.xlu0 %v1177, 126
    %v1186 = vpop.permute.xlu0 %1185
    %v1187 = vsel %vm361, %v1182, %v1184
    %v1188 = vsel %vm361, %v1184, %v1186
    %v1191 = vadd.f32 %v1170, %v1187
    %v1192 = vadd.f32 %v1171, %v1188
    %v1193 = vstv %s1173
    %v1194 = vmul.f32 %v1193, %v230
    %v1195 = vmul.f32 %v1193, %v231
    %v1196 = vmul.f32 %v1193, %v232
    %1200 = vrot.lane.b32.xlu0 %v1194, 126
    %v1201 = vpop.permute.xlu0 %1200
    %1202 = vrot.lane.b32.xlu0 %v1195, 126
    %v1203 = vpop.permute.xlu0 %1202
    %1204 = vrot.lane.b32.xlu0 %v1196, 126
    %v1205 = vpop.permute.xlu0 %1204
    %v1206 = vsel %vm361, %v1201, %v1203
    %v1207 = vsel %vm361, %v1203, %v1205
    %v1210 = vadd.f32 %v1191, %v1206
    %v1211 = vadd.f32 %v1192, %v1207
    %s1212 = sld [smem:[#allocation6 + $0x18]]
    %s1213 = sld [smem:[#allocation6 + $0x49]]
    %v1214 = vstv %s1212
    %v1215 = vmul.f32 %v1214, %v165
    %v1216 = vmul.f32 %v1214, %v161
    %v1217 = vmul.f32 %v1214, %v166
    %1221 = vrot.lane.b32.xlu0 %v1215, 125
    %v1222 = vpop.permute.xlu0 %1221
    %1223 = vrot.lane.b32.xlu0 %v1216, 125
    %v1224 = vpop.permute.xlu0 %1223
    %1225 = vrot.lane.b32.xlu0 %v1217, 125
    %v1226 = vpop.permute.xlu0 %1225
    %v1227 = vsel %vm402, %v1222, %v1224
    %v1228 = vsel %vm402, %v1224, %v1226
    %v1231 = vadd.f32 %v1210, %v1227
    %v1232 = vadd.f32 %v1211, %v1228
    %v1233 = vstv %s1213
    %v1234 = vmul.f32 %v1233, %v181
    %v1235 = vmul.f32 %v1233, %v177
    %v1236 = vmul.f32 %v1233, %v182
    %1240 = vrot.lane.b32.xlu0 %v1234, 125
    %v1241 = vpop.permute.xlu0 %1240
    %1242 = vrot.lane.b32.xlu0 %v1235, 125
    %v1243 = vpop.permute.xlu0 %1242
    %1244 = vrot.lane.b32.xlu0 %v1236, 125
    %v1245 = vpop.permute.xlu0 %1244
    %v1246 = vsel %vm402, %v1241, %v1243
    %v1247 = vsel %vm402, %v1243, %v1245
    %v1250 = vadd.f32 %v1231, %v1246
    %v1251 = vadd.f32 %v1232, %v1247
    %s1252 = sld [smem:[#allocation6 + $0x19]]
    %s1253 = sld [smem:[#allocation6 + $0x4a]]
    %v1254 = vstv %s1252
    %v1255 = vmul.f32 %v1254, %v247
    %v1256 = vmul.f32 %v1254, %v248
    %v1257 = vmul.f32 %v1254, %v249
    %1261 = vrot.lane.b32.xlu0 %v1255, 124
    %v1262 = vpop.permute.xlu0 %1261
    %1263 = vrot.lane.b32.xlu0 %v1256, 124
    %v1264 = vpop.permute.xlu0 %1263
    %1265 = vrot.lane.b32.xlu0 %v1257, 124
    %v1266 = vpop.permute.xlu0 %1265
    %v1267 = vsel %vm443, %v1262, %v1264
    %v1268 = vsel %vm443, %v1264, %v1266
    %v1271 = vadd.f32 %v1250, %v1267
    %v1272 = vadd.f32 %v1251, %v1268
    %v1273 = vstv %s1253
    %v1274 = vmul.f32 %v1273, %v250
    %v1275 = vmul.f32 %v1273, %v251
    %v1276 = vmul.f32 %v1273, %v252
    %1280 = vrot.lane.b32.xlu0 %v1274, 124
    %v1281 = vpop.permute.xlu0 %1280
    %1282 = vrot.lane.b32.xlu0 %v1275, 124
    %v1283 = vpop.permute.xlu0 %1282
    %1284 = vrot.lane.b32.xlu0 %v1276, 124
    %v1285 = vpop.permute.xlu0 %1284
    %v1286 = vsel %vm443, %v1281, %v1283
    %v1287 = vsel %vm443, %v1283, %v1285
    %v1290 = vadd.f32 %v1271, %v1286
    %v1291 = vadd.f32 %v1272, %v1287
    %s1292 = sld [smem:[#allocation6 + $0x1a]]
    %s1293 = sld [smem:[#allocation6 + $0x4b]]
    %v1294 = vstv %s1292
    %v1295 = vmul.f32 %v1294, %v267
    %v1296 = vmul.f32 %v1294, %v268
    %v1297 = vmul.f32 %v1294, %v269
    %1301 = vrot.lane.b32.xlu0 %v1295, 123
    %v1302 = vpop.permute.xlu0 %1301
    %1303 = vrot.lane.b32.xlu0 %v1296, 123
    %v1304 = vpop.permute.xlu0 %1303
    %1305 = vrot.lane.b32.xlu0 %v1297, 123
    %v1306 = vpop.permute.xlu0 %1305
    %v1307 = vsel %vm484, %v1302, %v1304
    %v1308 = vsel %vm484, %v1304, %v1306
    %v1311 = vadd.f32 %v1290, %v1307
    %v1312 = vadd.f32 %v1291, %v1308
    %v1313 = vstv %s1293
    %v1314 = vmul.f32 %v1313, %v270
    %v1315 = vmul.f32 %v1313, %v271
    %v1316 = vmul.f32 %v1313, %v272
    %1320 = vrot.lane.b32.xlu0 %v1314, 123
    %v1321 = vpop.permute.xlu0 %1320
    %1322 = vrot.lane.b32.xlu0 %v1315, 123
    %v1323 = vpop.permute.xlu0 %1322
    %1324 = vrot.lane.b32.xlu0 %v1316, 123
    %v1325 = vpop.permute.xlu0 %1324
    %v1326 = vsel %vm484, %v1321, %v1323
    %v1327 = vsel %vm484, %v1323, %v1325
    %v1330 = vadd.f32 %v1311, %v1326
    %v1331 = vadd.f32 %v1312, %v1327
    %s1332 = sld [smem:[#allocation6 + $0x1b]]
    %s1333 = sld [smem:[#allocation6 + $0x4c]]
    %v1334 = vstv %s1332
    %v1335 = vmul.f32 %v1334, %v287
    %v1336 = vmul.f32 %v1334, %v288
    %v1337 = vmul.f32 %v1334, %v289
    %1341 = vrot.lane.b32.xlu0 %v1335, 122
    %v1342 = vpop.permute.xlu0 %1341
    %1343 = vrot.lane.b32.xlu0 %v1336, 122
    %v1344 = vpop.permute.xlu0 %1343
    %1345 = vrot.lane.b32.xlu0 %v1337, 122
    %v1346 = vpop.permute.xlu0 %1345
    %v1347 = vsel %vm525, %v1342, %v1344
    %v1348 = vsel %vm525, %v1344, %v1346
    %v1351 = vadd.f32 %v1330, %v1347
    %v1352 = vadd.f32 %v1331, %v1348
    %v1353 = vstv %s1333
    %v1354 = vmul.f32 %v1353, %v290
    %v1355 = vmul.f32 %v1353, %v291
    %v1356 = vmul.f32 %v1353, %v292
    %1360 = vrot.lane.b32.xlu0 %v1354, 122
    %v1361 = vpop.permute.xlu0 %1360
    %1362 = vrot.lane.b32.xlu0 %v1355, 122
    %v1363 = vpop.permute.xlu0 %1362
    %1364 = vrot.lane.b32.xlu0 %v1356, 122
    %v1365 = vpop.permute.xlu0 %1364
    %v1366 = vsel %vm525, %v1361, %v1363
    %v1367 = vsel %vm525, %v1363, %v1365
    %v1370 = vadd.f32 %v1351, %v1366
    %v1371 = vadd.f32 %v1352, %v1367
    %v1372 = vadd.f32 %v1118, %v1370
    %v1373 = vadd.f32 %v1119, %v1371
    %s1374 = sld [smem:[#allocation6 + $0x1c]]
    %s1375 = sld [smem:[#allocation6 + $0x4d]]
    %v1376 = vstv %s1374
    %v1377 = vmul.f32 %v1376, %v189
    %v1378 = vmul.f32 %v1376, %v190
    %v1379 = vadd.f32 %v1377, 0.0
    %v1380 = vadd.f32 %v1378, 0.0
    %v1381 = vstv %s1375
    %v1382 = vmul.f32 %v1381, %v191
    %v1383 = vmul.f32 %v1381, %v192
    %v1384 = vadd.f32 %v1379, %v1382
    %v1385 = vadd.f32 %v1380, %v1383
    %s1386 = sld [smem:[#allocation6 + $0x1d]]
    %s1387 = sld [smem:[#allocation6 + $0x4e]]
    %v1388 = vstv %s1386
    %v1389 = vmul.f32 %v1388, %v207
    %v1390 = vmul.f32 %v1388, %v208
    %v1391 = vmul.f32 %v1388, %v209
    %1395 = vrot.lane.b32.xlu0 %v1389, 127
    %v1396 = vpop.permute.xlu0 %1395
    %1397 = vrot.lane.b32.xlu0 %v1390, 127
    %v1398 = vpop.permute.xlu0 %1397
    %1399 = vrot.lane.b32.xlu0 %v1391, 127
    %v1400 = vpop.permute.xlu0 %1399
    %v1401 = vsel %vm320, %v1396, %v1398
    %v1402 = vsel %vm320, %v1398, %v1400
    %v1405 = vadd.f32 %v1384, %v1401
    %v1406 = vadd.f32 %v1385, %v1402
    %v1407 = vstv %s1387
    %v1408 = vmul.f32 %v1407, %v210
    %v1409 = vmul.f32 %v1407, %v211
    %v1410 = vmul.f32 %v1407, %v212
    %1414 = vrot.lane.b32.xlu0 %v1408, 127
    %v1415 = vpop.permute.xlu0 %1414
    %1416 = vrot.lane.b32.xlu0 %v1409, 127
    %v1417 = vpop.permute.xlu0 %1416
    %1418 = vrot.lane.b32.xlu0 %v1410, 127
    %v1419 = vpop.permute.xlu0 %1418
    %v1420 = vsel %vm320, %v1415, %v1417
    %v1421 = vsel %vm320, %v1417, %v1419
    %v1424 = vadd.f32 %v1405, %v1420
    %v1425 = vadd.f32 %v1406, %v1421
    %s1426 = sld [smem:[#allocation6 + $0x1e]]
    %s1427 = sld [smem:[#allocation6 + $0x4f]]
    %v1428 = vstv %s1426
    %v1429 = vmul.f32 %v1428, %v227
    %v1430 = vmul.f32 %v1428, %v228
    %v1431 = vmul.f32 %v1428, %v229
    %1435 = vrot.lane.b32.xlu0 %v1429, 126
    %v1436 = vpop.permute.xlu0 %1435
    %1437 = vrot.lane.b32.xlu0 %v1430, 126
    %v1438 = vpop.permute.xlu0 %1437
    %1439 = vrot.lane.b32.xlu0 %v1431, 126
    %v1440 = vpop.permute.xlu0 %1439
    %v1441 = vsel %vm361, %v1436, %v1438
    %v1442 = vsel %vm361, %v1438, %v1440
    %v1445 = vadd.f32 %v1424, %v1441
    %v1446 = vadd.f32 %v1425, %v1442
    %v1447 = vstv %s1427
    %v1448 = vmul.f32 %v1447, %v230
    %v1449 = vmul.f32 %v1447, %v231
    %v1450 = vmul.f32 %v1447, %v232
    %1454 = vrot.lane.b32.xlu0 %v1448, 126
    %v1455 = vpop.permute.xlu0 %1454
    %1456 = vrot.lane.b32.xlu0 %v1449, 126
    %v1457 = vpop.permute.xlu0 %1456
    %1458 = vrot.lane.b32.xlu0 %v1450, 126
    %v1459 = vpop.permute.xlu0 %1458
    %v1460 = vsel %vm361, %v1455, %v1457
    %v1461 = vsel %vm361, %v1457, %v1459
    %v1464 = vadd.f32 %v1445, %v1460
    %v1465 = vadd.f32 %v1446, %v1461
    %s1466 = sld [smem:[#allocation6 + $0x1f]]
    %s1467 = sld [smem:[#allocation6 + $0x50]]
    %v1468 = vstv %s1466
    %v1469 = vmul.f32 %v1468, %v165
    %v1470 = vmul.f32 %v1468, %v161
    %v1471 = vmul.f32 %v1468, %v166
    %1475 = vrot.lane.b32.xlu0 %v1469, 125
    %v1476 = vpop.permute.xlu0 %1475
    %1477 = vrot.lane.b32.xlu0 %v1470, 125
    %v1478 = vpop.permute.xlu0 %1477
    %1479 = vrot.lane.b32.xlu0 %v1471, 125
    %v1480 = vpop.permute.xlu0 %1479
    %v1481 = vsel %vm402, %v1476, %v1478
    %v1482 = vsel %vm402, %v1478, %v1480
    %v1485 = vadd.f32 %v1464, %v1481
    %v1486 = vadd.f32 %v1465, %v1482
    %v1487 = vstv %s1467
    %v1488 = vmul.f32 %v1487, %v181
    %v1489 = vmul.f32 %v1487, %v177
    %v1490 = vmul.f32 %v1487, %v182
    %1494 = vrot.lane.b32.xlu0 %v1488, 125
    %v1495 = vpop.permute.xlu0 %1494
    %1496 = vrot.lane.b32.xlu0 %v1489, 125
    %v1497 = vpop.permute.xlu0 %1496
    %1498 = vrot.lane.b32.xlu0 %v1490, 125
    %v1499 = vpop.permute.xlu0 %1498
    %v1500 = vsel %vm402, %v1495, %v1497
    %v1501 = vsel %vm402, %v1497, %v1499
    %v1504 = vadd.f32 %v1485, %v1500
    %v1505 = vadd.f32 %v1486, %v1501
    %s1506 = sld [smem:[#allocation6 + $0x20]]
    %s1507 = sld [smem:[#allocation6 + $0x51]]
    %v1508 = vstv %s1506
    %v1509 = vmul.f32 %v1508, %v247
    %v1510 = vmul.f32 %v1508, %v248
    %v1511 = vmul.f32 %v1508, %v249
    %1515 = vrot.lane.b32.xlu0 %v1509, 124
    %v1516 = vpop.permute.xlu0 %1515
    %1517 = vrot.lane.b32.xlu0 %v1510, 124
    %v1518 = vpop.permute.xlu0 %1517
    %1519 = vrot.lane.b32.xlu0 %v1511, 124
    %v1520 = vpop.permute.xlu0 %1519
    %v1521 = vsel %vm443, %v1516, %v1518
    %v1522 = vsel %vm443, %v1518, %v1520
    %v1525 = vadd.f32 %v1504, %v1521
    %v1526 = vadd.f32 %v1505, %v1522
    %v1527 = vstv %s1507
    %v1528 = vmul.f32 %v1527, %v250
    %v1529 = vmul.f32 %v1527, %v251
    %v1530 = vmul.f32 %v1527, %v252
    %1534 = vrot.lane.b32.xlu0 %v1528, 124
    %v1535 = vpop.permute.xlu0 %1534
    %1536 = vrot.lane.b32.xlu0 %v1529, 124
    %v1537 = vpop.permute.xlu0 %1536
    %1538 = vrot.lane.b32.xlu0 %v1530, 124
    %v1539 = vpop.permute.xlu0 %1538
    %v1540 = vsel %vm443, %v1535, %v1537
    %v1541 = vsel %vm443, %v1537, %v1539
    %v1544 = vadd.f32 %v1525, %v1540
    %v1545 = vadd.f32 %v1526, %v1541
    %s1546 = sld [smem:[#allocation6 + $0x21]]
    %s1547 = sld [smem:[#allocation6 + $0x52]]
    %v1548 = vstv %s1546
    %v1549 = vmul.f32 %v1548, %v267
    %v1550 = vmul.f32 %v1548, %v268
    %v1551 = vmul.f32 %v1548, %v269
    %1555 = vrot.lane.b32.xlu0 %v1549, 123
    %v1556 = vpop.permute.xlu0 %1555
    %1557 = vrot.lane.b32.xlu0 %v1550, 123
    %v1558 = vpop.permute.xlu0 %1557
    %1559 = vrot.lane.b32.xlu0 %v1551, 123
    %v1560 = vpop.permute.xlu0 %1559
    %v1561 = vsel %vm484, %v1556, %v1558
    %v1562 = vsel %vm484, %v1558, %v1560
    %v1565 = vadd.f32 %v1544, %v1561
    %v1566 = vadd.f32 %v1545, %v1562
    %v1567 = vstv %s1547
    %v1568 = vmul.f32 %v1567, %v270
    %v1569 = vmul.f32 %v1567, %v271
    %v1570 = vmul.f32 %v1567, %v272
    %1574 = vrot.lane.b32.xlu0 %v1568, 123
    %v1575 = vpop.permute.xlu0 %1574
    %1576 = vrot.lane.b32.xlu0 %v1569, 123
    %v1577 = vpop.permute.xlu0 %1576
    %1578 = vrot.lane.b32.xlu0 %v1570, 123
    %v1579 = vpop.permute.xlu0 %1578
    %v1580 = vsel %vm484, %v1575, %v1577
    %v1581 = vsel %vm484, %v1577, %v1579
    %v1584 = vadd.f32 %v1565, %v1580
    %v1585 = vadd.f32 %v1566, %v1581
    %s1586 = sld [smem:[#allocation6 + $0x22]]
    %s1587 = sld [smem:[#allocation6 + $0x53]]
    %v1588 = vstv %s1586
    %v1589 = vmul.f32 %v1588, %v287
    %v1590 = vmul.f32 %v1588, %v288
    %v1591 = vmul.f32 %v1588, %v289
    %1595 = vrot.lane.b32.xlu0 %v1589, 122
    %v1596 = vpop.permute.xlu0 %1595
    %1597 = vrot.lane.b32.xlu0 %v1590, 122
    %v1598 = vpop.permute.xlu0 %1597
    %1599 = vrot.lane.b32.xlu0 %v1591, 122
    %v1600 = vpop.permute.xlu0 %1599
    %v1601 = vsel %vm525, %v1596, %v1598
    %v1602 = vsel %vm525, %v1598, %v1600
    %v1605 = vadd.f32 %v1584, %v1601
    %v1606 = vadd.f32 %v1585, %v1602
    %v1607 = vstv %s1587
    %v1608 = vmul.f32 %v1607, %v290
    %v1609 = vmul.f32 %v1607, %v291
    %v1610 = vmul.f32 %v1607, %v292
    %1614 = vrot.lane.b32.xlu0 %v1608, 122
    %v1615 = vpop.permute.xlu0 %1614
    %1616 = vrot.lane.b32.xlu0 %v1609, 122
    %v1617 = vpop.permute.xlu0 %1616
    %1618 = vrot.lane.b32.xlu0 %v1610, 122
    %v1619 = vpop.permute.xlu0 %1618
    %v1620 = vsel %vm525, %v1615, %v1617
    %v1621 = vsel %vm525, %v1617, %v1619
    %v1624 = vadd.f32 %v1605, %v1620
    %v1625 = vadd.f32 %v1606, %v1621
    %1628 = vrot.lane.b32.xlu0 %v1624, 48
    %v1629 = vpop.permute.xlu0 %1628
    %1630 = vrot.lane.b32.xlu0 %v1625, 48
    %v1631 = vpop.permute.xlu0 %1630
    %v1632 = vsel %vm557, %v1629, %v1631
    %v1635 = vsel %vm557, 0.0, %v1629
    %v1636 = vsel %vm557, %v1631, 0.0
    %1639 = vrot.lane.b32.xlu0 %v1635, 64
    %v1640 = vpop.permute.xlu0 %1639
    %1641 = vrot.lane.b32.xlu0 %v1632, 64
    %v1642 = vpop.permute.xlu0 %1641
    %1643 = vrot.lane.b32.xlu0 %v1636, 64
    %v1644 = vpop.permute.xlu0 %1643
    %vm1645 = vcmask 523264
    %v1646 = vsel %vm1645, %v1640, %v1642
    %v1647 = vsel %vm1645, %v1642, %v1644
    %v1650 = vadd.f32 %v1372, %v1646
    %v1651 = vadd.f32 %v1373, %v1647
    %s1652 = sld [smem:[#allocation6 + $0x23]]
    %s1653 = sld [smem:[#allocation6 + $0x54]]
    %v1654 = vstv %s1652
    %v1655 = vmul.f32 %v1654, %v189
    %v1656 = vmul.f32 %v1654, %v190
    %v1657 = vadd.f32 %v1655, 0.0
    %v1658 = vadd.f32 %v1656, 0.0
    %v1659 = vstv %s1653
    %v1660 = vmul.f32 %v1659, %v191
    %v1661 = vmul.f32 %v1659, %v192
    %v1662 = vadd.f32 %v1657, %v1660
    %v1663 = vadd.f32 %v1658, %v1661
    %s1664 = sld [smem:[#allocation6 + $0x24]]
    %s1665 = sld [smem:[#allocation6 + $0x55]]
    %v1666 = vstv %s1664
    %v1667 = vmul.f32 %v1666, %v207
    %v1668 = vmul.f32 %v1666, %v208
    %v1669 = vmul.f32 %v1666, %v209
    %1673 = vrot.lane.b32.xlu0 %v1667, 127
    %v1674 = vpop.permute.xlu0 %1673
    %1675 = vrot.lane.b32.xlu0 %v1668, 127
    %v1676 = vpop.permute.xlu0 %1675
    %1677 = vrot.lane.b32.xlu0 %v1669, 127
    %v1678 = vpop.permute.xlu0 %1677
    %v1679 = vsel %vm320, %v1674, %v1676
    %v1680 = vsel %vm320, %v1676, %v1678
    %v1683 = vadd.f32 %v1662, %v1679
    %v1684 = vadd.f32 %v1663, %v1680
    %v1685 = vstv %s1665
    %v1686 = vmul.f32 %v1685, %v210
    %v1687 = vmul.f32 %v1685, %v211
    %v1688 = vmul.f32 %v1685, %v212
    %1692 = vrot.lane.b32.xlu0 %v1686, 127
    %v1693 = vpop.permute.xlu0 %1692
    %1694 = vrot.lane.b32.xlu0 %v1687, 127
    %v1695 = vpop.permute.xlu0 %1694
    %1696 = vrot.lane.b32.xlu0 %v1688, 127
    %v1697 = vpop.permute.xlu0 %1696
    %v1698 = vsel %vm320, %v1693, %v1695
    %v1699 = vsel %vm320, %v1695, %v1697
    %v1702 = vadd.f32 %v1683, %v1698
    %v1703 = vadd.f32 %v1684, %v1699
    %s1704 = sld [smem:[#allocation6 + $0x25]]
    %s1705 = sld [smem:[#allocation6 + $0x56]]
    %v1706 = vstv %s1704
    %v1707 = vmul.f32 %v1706, %v227
    %v1708 = vmul.f32 %v1706, %v228
    %v1709 = vmul.f32 %v1706, %v229
    %1713 = vrot.lane.b32.xlu0 %v1707, 126
    %v1714 = vpop.permute.xlu0 %1713
    %1715 = vrot.lane.b32.xlu0 %v1708, 126
    %v1716 = vpop.permute.xlu0 %1715
    %1717 = vrot.lane.b32.xlu0 %v1709, 126
    %v1718 = vpop.permute.xlu0 %1717
    %v1719 = vsel %vm361, %v1714, %v1716
    %v1720 = vsel %vm361, %v1716, %v1718
    %v1723 = vadd.f32 %v1702, %v1719
    %v1724 = vadd.f32 %v1703, %v1720
    %v1725 = vstv %s1705
    %v1726 = vmul.f32 %v1725, %v230
    %v1727 = vmul.f32 %v1725, %v231
    %v1728 = vmul.f32 %v1725, %v232
    %1732 = vrot.lane.b32.xlu0 %v1726, 126
    %v1733 = vpop.permute.xlu0 %1732
    %1734 = vrot.lane.b32.xlu0 %v1727, 126
    %v1735 = vpop.permute.xlu0 %1734
    %1736 = vrot.lane.b32.xlu0 %v1728, 126
    %v1737 = vpop.permute.xlu0 %1736
    %v1738 = vsel %vm361, %v1733, %v1735
    %v1739 = vsel %vm361, %v1735, %v1737
    %v1742 = vadd.f32 %v1723, %v1738
    %v1743 = vadd.f32 %v1724, %v1739
    %s1744 = sld [smem:[#allocation6 + $0x26]]
    %s1745 = sld [smem:[#allocation6 + $0x57]]
    %v1746 = vstv %s1744
    %v1747 = vmul.f32 %v1746, %v165
    %v1748 = vmul.f32 %v1746, %v161
    %v1749 = vmul.f32 %v1746, %v166
    %1753 = vrot.lane.b32.xlu0 %v1747, 125
    %v1754 = vpop.permute.xlu0 %1753
    %1755 = vrot.lane.b32.xlu0 %v1748, 125
    %v1756 = vpop.permute.xlu0 %1755
    %1757 = vrot.lane.b32.xlu0 %v1749, 125
    %v1758 = vpop.permute.xlu0 %1757
    %v1759 = vsel %vm402, %v1754, %v1756
    %v1760 = vsel %vm402, %v1756, %v1758
    %v1763 = vadd.f32 %v1742, %v1759
    %v1764 = vadd.f32 %v1743, %v1760
    %v1765 = vstv %s1745
    %v1766 = vmul.f32 %v1765, %v181
    %v1767 = vmul.f32 %v1765, %v177
    %v1768 = vmul.f32 %v1765, %v182
    %1772 = vrot.lane.b32.xlu0 %v1766, 125
    %v1773 = vpop.permute.xlu0 %1772
    %1774 = vrot.lane.b32.xlu0 %v1767, 125
    %v1775 = vpop.permute.xlu0 %1774
    %1776 = vrot.lane.b32.xlu0 %v1768, 125
    %v1777 = vpop.permute.xlu0 %1776
    %v1778 = vsel %vm402, %v1773, %v1775
    %v1779 = vsel %vm402, %v1775, %v1777
    %v1782 = vadd.f32 %v1763, %v1778
    %v1783 = vadd.f32 %v1764, %v1779
    %s1784 = sld [smem:[#allocation6 + $0x27]]
    %s1785 = sld [smem:[#allocation6 + $0x58]]
    %v1786 = vstv %s1784
    %v1787 = vmul.f32 %v1786, %v247
    %v1788 = vmul.f32 %v1786, %v248
    %v1789 = vmul.f32 %v1786, %v249
    %1793 = vrot.lane.b32.xlu0 %v1787, 124
    %v1794 = vpop.permute.xlu0 %1793
    %1795 = vrot.lane.b32.xlu0 %v1788, 124
    %v1796 = vpop.permute.xlu0 %1795
    %1797 = vrot.lane.b32.xlu0 %v1789, 124
    %v1798 = vpop.permute.xlu0 %1797
    %v1799 = vsel %vm443, %v1794, %v1796
    %v1800 = vsel %vm443, %v1796, %v1798
    %v1803 = vadd.f32 %v1782, %v1799
    %v1804 = vadd.f32 %v1783, %v1800
    %v1805 = vstv %s1785
    %v1806 = vmul.f32 %v1805, %v250
    %v1807 = vmul.f32 %v1805, %v251
    %v1808 = vmul.f32 %v1805, %v252
    %1812 = vrot.lane.b32.xlu0 %v1806, 124
    %v1813 = vpop.permute.xlu0 %1812
    %1814 = vrot.lane.b32.xlu0 %v1807, 124
    %v1815 = vpop.permute.xlu0 %1814
    %1816 = vrot.lane.b32.xlu0 %v1808, 124
    %v1817 = vpop.permute.xlu0 %1816
    %v1818 = vsel %vm443, %v1813, %v1815
    %v1819 = vsel %vm443, %v1815, %v1817
    %v1822 = vadd.f32 %v1803, %v1818
    %v1823 = vadd.f32 %v1804, %v1819
    %s1824 = sld [smem:[#allocation6 + $0x28]]
    %s1825 = sld [smem:[#allocation6 + $0x59]]
    %v1826 = vstv %s1824
    %v1827 = vmul.f32 %v1826, %v267
    %v1828 = vmul.f32 %v1826, %v268
    %v1829 = vmul.f32 %v1826, %v269
    %1833 = vrot.lane.b32.xlu0 %v1827, 123
    %v1834 = vpop.permute.xlu0 %1833
    %1835 = vrot.lane.b32.xlu0 %v1828, 123
    %v1836 = vpop.permute.xlu0 %1835
    %1837 = vrot.lane.b32.xlu0 %v1829, 123
    %v1838 = vpop.permute.xlu0 %1837
    %v1839 = vsel %vm484, %v1834, %v1836
    %v1840 = vsel %vm484, %v1836, %v1838
    %v1843 = vadd.f32 %v1822, %v1839
    %v1844 = vadd.f32 %v1823, %v1840
    %v1845 = vstv %s1825
    %v1846 = vmul.f32 %v1845, %v270
    %v1847 = vmul.f32 %v1845, %v271
    %v1848 = vmul.f32 %v1845, %v272
    %1852 = vrot.lane.b32.xlu0 %v1846, 123
    %v1853 = vpop.permute.xlu0 %1852
    %1854 = vrot.lane.b32.xlu0 %v1847, 123
    %v1855 = vpop.permute.xlu0 %1854
    %1856 = vrot.lane.b32.xlu0 %v1848, 123
    %v1857 = vpop.permute.xlu0 %1856
    %v1858 = vsel %vm484, %v1853, %v1855
    %v1859 = vsel %vm484, %v1855, %v1857
    %v1862 = vadd.f32 %v1843, %v1858
    %v1863 = vadd.f32 %v1844, %v1859
    %s1864 = sld [smem:[#allocation6 + $0x29]]
    %s1865 = sld [smem:[#allocation6 + $0x5a]]
    %v1866 = vstv %s1864
    %v1867 = vmul.f32 %v1866, %v287
    %v1868 = vmul.f32 %v1866, %v288
    %v1869 = vmul.f32 %v1866, %v289
    %1873 = vrot.lane.b32.xlu0 %v1867, 122
    %v1874 = vpop.permute.xlu0 %1873
    %1875 = vrot.lane.b32.xlu0 %v1868, 122
    %v1876 = vpop.permute.xlu0 %1875
    %1877 = vrot.lane.b32.xlu0 %v1869, 122
    %v1878 = vpop.permute.xlu0 %1877
    %v1879 = vsel %vm525, %v1874, %v1876
    %v1880 = vsel %vm525, %v1876, %v1878
    %v1883 = vadd.f32 %v1862, %v1879
    %v1884 = vadd.f32 %v1863, %v1880
    %v1885 = vstv %s1865
    %v1886 = vmul.f32 %v1885, %v290
    %v1887 = vmul.f32 %v1885, %v291
    %v1888 = vmul.f32 %v1885, %v292
    %1892 = vrot.lane.b32.xlu0 %v1886, 122
    %v1893 = vpop.permute.xlu0 %1892
    %1894 = vrot.lane.b32.xlu0 %v1887, 122
    %v1895 = vpop.permute.xlu0 %1894
    %1896 = vrot.lane.b32.xlu0 %v1888, 122
    %v1897 = vpop.permute.xlu0 %1896
    %v1898 = vsel %vm525, %v1893, %v1895
    %v1899 = vsel %vm525, %v1895, %v1897
    %v1902 = vadd.f32 %v1883, %v1898
    %v1903 = vadd.f32 %v1884, %v1899
    %1906 = vrot.lane.b32.xlu0 %v1902, 48
    %v1907 = vpop.permute.xlu0 %1906
    %1908 = vrot.lane.b32.xlu0 %v1903, 48
    %v1909 = vpop.permute.xlu0 %1908
    %v1910 = vsel %vm557, %v1907, %v1909
    %v1913 = vsel %vm557, 0.0, %v1907
    %v1914 = vsel %vm557, %v1909, 0.0
    %1917 = vrot.lane.b32.xlu0 %v1913, 48
    %v1918 = vpop.permute.xlu0 %1917
    %1919 = vrot.lane.b32.xlu0 %v1910, 48
    %v1920 = vpop.permute.xlu0 %1919
    %1921 = vrot.lane.b32.xlu0 %v1914, 48
    %v1922 = vpop.permute.xlu0 %1921
    %v1923 = vsel %vm557, %v1918, %v1920
    %v1924 = vsel %vm557, %v1920, %v1922
    %v1927 = vadd.f32 %v1650, %v1923
    %v1928 = vadd.f32 %v1651, %v1924
    %s1929 = sld [smem:[#allocation6 + $0x2a]]
    %s1930 = sld [smem:[#allocation6 + $0x5b]]
    %v1931 = vstv %s1929
    %v1932 = vmul.f32 %v1931, %v189
    %v1933 = vmul.f32 %v1931, %v190
    %v1934 = vadd.f32 %v1932, 0.0
    %v1935 = vadd.f32 %v1933, 0.0
    %v1936 = vstv %s1930
    %v1937 = vmul.f32 %v1936, %v191
    %v1938 = vmul.f32 %v1936, %v192
    %v1939 = vadd.f32 %v1934, %v1937
    %v1940 = vadd.f32 %v1935, %v1938
    %s1941 = sld [smem:[#allocation6 + $0x2b]]
    %s1942 = sld [smem:[#allocation6 + $0x5c]]
    %v1943 = vstv %s1941
    %v1944 = vmul.f32 %v1943, %v207
    %v1945 = vmul.f32 %v1943, %v208
    %v1946 = vmul.f32 %v1943, %v209
    %1950 = vrot.lane.b32.xlu0 %v1944, 127
    %v1951 = vpop.permute.xlu0 %1950
    %1952 = vrot.lane.b32.xlu0 %v1945, 127
    %v1953 = vpop.permute.xlu0 %1952
    %1954 = vrot.lane.b32.xlu0 %v1946, 127
    %v1955 = vpop.permute.xlu0 %1954
    %v1956 = vsel %vm320, %v1951, %v1953
    %v1957 = vsel %vm320, %v1953, %v1955
    %v1960 = vadd.f32 %v1939, %v1956
    %v1961 = vadd.f32 %v1940, %v1957
    %v1962 = vstv %s1942
    %v1963 = vmul.f32 %v1962, %v210
    %v1964 = vmul.f32 %v1962, %v211
    %v1965 = vmul.f32 %v1962, %v212
    %1969 = vrot.lane.b32.xlu0 %v1963, 127
    %v1970 = vpop.permute.xlu0 %1969
    %1971 = vrot.lane.b32.xlu0 %v1964, 127
    %v1972 = vpop.permute.xlu0 %1971
    %1973 = vrot.lane.b32.xlu0 %v1965, 127
    %v1974 = vpop.permute.xlu0 %1973
    %v1975 = vsel %vm320, %v1970, %v1972
    %v1976 = vsel %vm320, %v1972, %v1974
    %v1979 = vadd.f32 %v1960, %v1975
    %v1980 = vadd.f32 %v1961, %v1976
    %s1981 = sld [smem:[#allocation6 + $0x2c]]
    %s1982 = sld [smem:[#allocation6 + $0x5d]]
    %v1983 = vstv %s1981
    %v1984 = vmul.f32 %v1983, %v227
    %v1985 = vmul.f32 %v1983, %v228
    %v1986 = vmul.f32 %v1983, %v229
    %1990 = vrot.lane.b32.xlu0 %v1984, 126
    %v1991 = vpop.permute.xlu0 %1990
    %1992 = vrot.lane.b32.xlu0 %v1985, 126
    %v1993 = vpop.permute.xlu0 %1992
    %1994 = vrot.lane.b32.xlu0 %v1986, 126
    %v1995 = vpop.permute.xlu0 %1994
    %v1996 = vsel %vm361, %v1991, %v1993
    %v1997 = vsel %vm361, %v1993, %v1995
    %v2000 = vadd.f32 %v1979, %v1996
    %v2001 = vadd.f32 %v1980, %v1997
    %v2002 = vstv %s1982
    %v2003 = vmul.f32 %v2002, %v230
    %v2004 = vmul.f32 %v2002, %v231
    %v2005 = vmul.f32 %v2002, %v232
    %2009 = vrot.lane.b32.xlu0 %v2003, 126
    %v2010 = vpop.permute.xlu0 %2009
    %2011 = vrot.lane.b32.xlu0 %v2004, 126
    %v2012 = vpop.permute.xlu0 %2011
    %2013 = vrot.lane.b32.xlu0 %v2005, 126
    %v2014 = vpop.permute.xlu0 %2013
    %v2015 = vsel %vm361, %v2010, %v2012
    %v2016 = vsel %vm361, %v2012, %v2014
    %v2019 = vadd.f32 %v2000, %v2015
    %v2020 = vadd.f32 %v2001, %v2016
    %s2021 = sld [smem:[#allocation6 + $0x2d]]
    %s2022 = sld [smem:[#allocation6 + $0x5e]]
    %v2023 = vstv %s2021
    %v2024 = vmul.f32 %v2023, %v165
    %v2025 = vmul.f32 %v2023, %v161
    %v2026 = vmul.f32 %v2023, %v166
    %2030 = vrot.lane.b32.xlu0 %v2024, 125
    %v2031 = vpop.permute.xlu0 %2030
    %2032 = vrot.lane.b32.xlu0 %v2025, 125
    %v2033 = vpop.permute.xlu0 %2032
    %2034 = vrot.lane.b32.xlu0 %v2026, 125
    %v2035 = vpop.permute.xlu0 %2034
    %v2036 = vsel %vm402, %v2031, %v2033
    %v2037 = vsel %vm402, %v2033, %v2035
    %v2040 = vadd.f32 %v2019, %v2036
    %v2041 = vadd.f32 %v2020, %v2037
    %v2042 = vstv %s2022
    %v2043 = vmul.f32 %v2042, %v181
    %v2044 = vmul.f32 %v2042, %v177
    %v2045 = vmul.f32 %v2042, %v182
    %2049 = vrot.lane.b32.xlu0 %v2043, 125
    %v2050 = vpop.permute.xlu0 %2049
    %2051 = vrot.lane.b32.xlu0 %v2044, 125
    %v2052 = vpop.permute.xlu0 %2051
    %2053 = vrot.lane.b32.xlu0 %v2045, 125
    %v2054 = vpop.permute.xlu0 %2053
    %v2055 = vsel %vm402, %v2050, %v2052
    %v2056 = vsel %vm402, %v2052, %v2054
    %v2059 = vadd.f32 %v2040, %v2055
    %v2060 = vadd.f32 %v2041, %v2056
    %s2061 = sld [smem:[#allocation6 + $0x2e]]
    %s2062 = sld [smem:[#allocation6 + $0x5f]]
    %v2063 = vstv %s2061
    %v2064 = vmul.f32 %v2063, %v247
    %v2065 = vmul.f32 %v2063, %v248
    %v2066 = vmul.f32 %v2063, %v249
    %2070 = vrot.lane.b32.xlu0 %v2064, 124
    %v2071 = vpop.permute.xlu0 %2070
    %2072 = vrot.lane.b32.xlu0 %v2065, 124
    %v2073 = vpop.permute.xlu0 %2072
    %2074 = vrot.lane.b32.xlu0 %v2066, 124
    %v2075 = vpop.permute.xlu0 %2074
    %v2076 = vsel %vm443, %v2071, %v2073
    %v2077 = vsel %vm443, %v2073, %v2075
    %v2080 = vadd.f32 %v2059, %v2076
    %v2081 = vadd.f32 %v2060, %v2077
    %v2082 = vstv %s2062
    %v2083 = vmul.f32 %v2082, %v250
    %v2084 = vmul.f32 %v2082, %v251
    %v2085 = vmul.f32 %v2082, %v252
    %2089 = vrot.lane.b32.xlu0 %v2083, 124
    %v2090 = vpop.permute.xlu0 %2089
    %2091 = vrot.lane.b32.xlu0 %v2084, 124
    %v2092 = vpop.permute.xlu0 %2091
    %2093 = vrot.lane.b32.xlu0 %v2085, 124
    %v2094 = vpop.permute.xlu0 %2093
    %v2095 = vsel %vm443, %v2090, %v2092
    %v2096 = vsel %vm443, %v2092, %v2094
    %v2099 = vadd.f32 %v2080, %v2095
    %v2100 = vadd.f32 %v2081, %v2096
    %s2101 = sld [smem:[#allocation6 + $0x2f]]
    %s2102 = sld [smem:[#allocation6 + $0x60]]
    %v2103 = vstv %s2101
    %v2104 = vmul.f32 %v2103, %v267
    %v2105 = vmul.f32 %v2103, %v268
    %v2106 = vmul.f32 %v2103, %v269
    %2110 = vrot.lane.b32.xlu0 %v2104, 123
    %v2111 = vpop.permute.xlu0 %2110
    %2112 = vrot.lane.b32.xlu0 %v2105, 123
    %v2113 = vpop.permute.xlu0 %2112
    %2114 = vrot.lane.b32.xlu0 %v2106, 123
    %v2115 = vpop.permute.xlu0 %2114
    %v2116 = vsel %vm484, %v2111, %v2113
    %v2117 = vsel %vm484, %v2113, %v2115
    %v2120 = vadd.f32 %v2099, %v2116
    %v2121 = vadd.f32 %v2100, %v2117
    %v2122 = vstv %s2102
    %v2123 = vmul.f32 %v2122, %v270
    %v2124 = vmul.f32 %v2122, %v271
    %v2125 = vmul.f32 %v2122, %v272
    %2129 = vrot.lane.b32.xlu0 %v2123, 123
    %v2130 = vpop.permute.xlu0 %2129
    %2131 = vrot.lane.b32.xlu0 %v2124, 123
    %v2132 = vpop.permute.xlu0 %2131
    %2133 = vrot.lane.b32.xlu0 %v2125, 123
    %v2134 = vpop.permute.xlu0 %2133
    %v2135 = vsel %vm484, %v2130, %v2132
    %v2136 = vsel %vm484, %v2132, %v2134
    %v2139 = vadd.f32 %v2120, %v2135
    %v2140 = vadd.f32 %v2121, %v2136
    %s2141 = sld [smem:[#allocation6 + $0x30]]
    %s2142 = sld [smem:[#allocation6 + $0x61]]
    %v2143 = vstv %s2141
    %v2144 = vmul.f32 %v2143, %v287
    %v2145 = vmul.f32 %v2143, %v288
    %v2146 = vmul.f32 %v2143, %v289
    %2150 = vrot.lane.b32.xlu0 %v2144, 122
    %v2151 = vpop.permute.xlu0 %2150
    %2152 = vrot.lane.b32.xlu0 %v2145, 122
    %v2153 = vpop.permute.xlu0 %2152
    %2154 = vrot.lane.b32.xlu0 %v2146, 122
    %v2155 = vpop.permute.xlu0 %2154
    %v2156 = vsel %vm525, %v2151, %v2153
    %v2157 = vsel %vm525, %v2153, %v2155
    %v2160 = vadd.f32 %v2139, %v2156
    %v2161 = vadd.f32 %v2140, %v2157
    %v2162 = vstv %s2142
    %v2163 = vmul.f32 %v2162, %v290
    %v2164 = vmul.f32 %v2162, %v291
    %v2165 = vmul.f32 %v2162, %v292
    %2169 = vrot.lane.b32.xlu0 %v2163, 122
    %v2170 = vpop.permute.xlu0 %2169
    %2171 = vrot.lane.b32.xlu0 %v2164, 122
    %v2172 = vpop.permute.xlu0 %2171
    %2173 = vrot.lane.b32.xlu0 %v2165, 122
    %v2174 = vpop.permute.xlu0 %2173
    %v2175 = vsel %vm525, %v2170, %v2172
    %v2176 = vsel %vm525, %v2172, %v2174
    %v2179 = vadd.f32 %v2160, %v2175
    %v2180 = vadd.f32 %v2161, %v2176
    %2183 = vrot.lane.b32.xlu0 %v2179, 48
    %v2184 = vpop.permute.xlu0 %2183
    %2185 = vrot.lane.b32.xlu0 %v2180, 48
    %v2186 = vpop.permute.xlu0 %2185
    %v2187 = vsel %vm557, %v2184, %v2186
    %v2190 = vsel %vm557, 0.0, %v2184
    %v2191 = vsel %vm557, %v2186, 0.0
    %2194 = vrot.lane.b32.xlu0 %v2190, 32
    %v2195 = vpop.permute.xlu0 %2194
    %2196 = vrot.lane.b32.xlu0 %v2187, 32
    %v2197 = vpop.permute.xlu0 %2196
    %2198 = vrot.lane.b32.xlu0 %v2191, 32
    %v2199 = vpop.permute.xlu0 %2198
    %vm2200 = vcmask 261120
    %v2201 = vsel %vm2200, %v2195, %v2197
    %v2202 = vsel %vm2200, %v2197, %v2199
    %v2205 = vadd.f32 %v1927, %v2201
    %v2206 = vadd.f32 %v1928, %v2202
    %v2207 = vsub.f32 0.0, %v2205
    %v2208 = vsub.f32 0.0, %v2206
    %v2209 = vmul.f32 %v2207, 1.442695
    %v2210 = vpow.pop %v2209
    %v2211 = vmul.f32 %v2208, 1.442695
    %v2212 = vpow.pop %v2211
    %v2213 = vadd.f32 %v2210, 1.0
    %v2214 = vadd.f32 %v2212, 1.0
    %v2215 = vrcp.pop %v2213
    %v2216 = vmul.f32 %v2213, %v2215
    %v2217 = vsub.f32 1.0, %v2216
    %v2218 = vmul.f32 %v2215, %v2217
    %v2219 = vadd.f32 %v2215, %v2218
    %vm2220 = vweird.f32 %v2213
    %vm2221 = vweird.f32 %v2215
    %vm2222 = vmor %vm2220, %vm2221
    %v2223 = vsel %vm2222, %v2215, %v2219
    %v2224 = vand.u32 2147483647, %v2213
    %vm2225 = vcmp.eq.f32.partialorder %v2224, 8.507059e+37
    %v2226 = vand.u32 %v2213, 2147483648
    %v2227 = vor.u32 1.1754944e-38, %v2226
    %v2228 = vsel %vm2225, %v2227, %v2223
    %v2229 = vrcp.pop %v2214
    %v2230 = vmul.f32 %v2214, %v2229
    %v2231 = vsub.f32 1.0, %v2230
    %v2232 = vmul.f32 %v2229, %v2231
    %v2233 = vadd.f32 %v2229, %v2232
    %vm2234 = vweird.f32 %v2214
    %vm2235 = vweird.f32 %v2229
    %vm2236 = vmor %vm2234, %vm2235
    %v2237 = vsel %vm2236, %v2229, %v2233
    %v2238 = vand.u32 2147483647, %v2214
    %vm2239 = vcmp.eq.f32.partialorder %v2238, 8.507059e+37
    %v2240 = vand.u32 %v2214, 2147483648
    %v2241 = vor.u32 1.1754944e-38, %v2240
    %v2242 = vsel %vm2239, %v2241, %v2237
    %v2245 = vrot.slane %v2242, 7
    %vm2246 = vcmask 1040384
    %v2247 = vsel %vm2246, %v2228, %v2245
    %v2248 = vsel %vm153, %v2228, %v2245
    %v2249 = vrot.slane %v2248, 1
    %v2252 = vlaneseq
    %vm2253 = vcmp.ge.s32.totalorder %v2252, 0
    %vm2254 = vcmp.lt.s32.totalorder %v2252, 256
    %vm2255 = vmand %vm2253, %vm2254
    %2256 = vst.msk [vmem:[#allocation9] sm:$0x3] %vm2255, %v2247
    %2257 = vst.msk [vmem:[#allocation9 + $0x2] sm:$0x3] %vm2255, %v2249
    // Predicated region
    $region26: #{tpu_custom_call.1} parent=1 // pred_check
      _
    $region27: #{tpu_custom_call.1} parent=1 // pred_check_branch
      %2259 = sbr.rel (0) target = $region29
    $region28: #{tpu_custom_call.1} parent=1 // pred_region
      %2261 = vsyncadd [#allocation4], 0
      %s2262 = sshll.u32 [#allocation9], 4
      %s2263 = int_to_ptr.vmem [resolvable:$true] %s2262
      %s2264 = sshll.u32 %s3, 4
      %s2265 = int_to_ptr.hbm [resolvable:$true] %s2264
      %2270 = dma.vmem_to_hbm [thread:$0]  %s2263, 64, %s2265, [#allocation4], 32, 32, 2
    $region29: #{tpu_custom_call.1} parent=1 // pred_fallthru
      _
    // Predicated region
    $region30: #{tpu_custom_call.1} parent=1 // pred_check
      _
    $region31: #{tpu_custom_call.1} parent=1 // pred_check_branch
      %2272 = sbr.rel (0) target = $region33
    $region32: #{tpu_custom_call.1} parent=1 // pred_region
      %2274 = dma.done [#allocation4], 64
    $region33: #{tpu_custom_call.1} parent=1 // pred_fallthru
      _
    %2275 = vsyncpa [#allocation3], 1
    %2276 = vsyncpa [#allocation8], 1
    %2277 = vsyncpa [#allocation4], 1
    %2278 = vsyncpa [#allocation5], 1

</llo_original>
